<compile_context>
chip_gen: v5e
topology: v5e:2x2
jax: 0.10.0
libtpu: 0.0.40
codegen_flags: <defaults>
</compile_context>

<pallas_src>
import functools

import numpy as np
import jax
import jax.numpy as jnp
from jax.experimental import pallas as pl
from jax.experimental.pallas import tpu as pltpu

EMBED_DIM = 12            # WaveTransform embed_dim (wavelet branch runs at embed_dim // 3 = 4)
J = 4                     # wavelet decomposition levels
NEG_SLOPE = 0.2

# db4 reconstruction low-pass filter (pywt Wavelet('db4').rec_lo).
_REC_LO = np.array([
    0.23037781330885523, 0.7148465705525415, 0.6308807679295904,
    -0.02798376941698385, -0.18703481171888114, 0.030841381835986965,
    0.032883011666982945, -0.010597401784997278], dtype=np.float64)
# rec_hi = QMF(rec_lo): reverse and negate odd taps (pywt convention).
_REC_HI = _REC_LO[::-1].copy()
_REC_HI[1::2] *= -1.0
_L = _REC_LO.shape[0]     # 8


def _pad128(n):
    return ((n + 127) // 128) * 128


# ------------------- db4 DWT/IDWT as dense filter matrices -----------------
# These reproduce pytorch_wavelets DWTForward/DWTInverse (J=4, 'db4',
# mode='symmetric'): same padding amounts, symmetric (half-sample) extension,
# stride-2 analysis correlation and transposed-conv synthesis.

def _sym_index(j, n):
    m = j % (2 * n)
    return m if m < n else 2 * n - 1 - m


def _analysis_matrix(n):
    """A (n, 2*nout): x @ A = [lowpass | highpass] along that axis."""
    h0, h1 = _REC_LO, _REC_HI                # dec filters reversed == rec filters
    nout = (n + _L - 1) // 2                 # pywt.dwt_coeff_len, symmetric
    p = 2 * (nout - 1) - n + _L
    pb = p // 2
    A = np.zeros((n, 2 * nout), dtype=np.float64)
    for m in range(nout):
        for k in range(_L):
            src = _sym_index(2 * m + k - pb, n)
            A[src, m] += h0[k]
            A[src, nout + m] += h1[k]
    return A, nout


def _synthesis_matrix(nin):
    """S (2*nin, nout): [lo | hi] @ S reconstructs along that axis."""
    p = _L - 2
    nout = 2 * nin - _L + 2
    S = np.zeros((2 * nin, nout), dtype=np.float64)
    for i in range(nin):
        for k in range(_L):
            j = 2 * i + k - p                # conv_transpose, stride 2
            if 0 <= j < nout:
                S[i, j] += _REC_LO[k]
                S[nin + i, j] += _REC_HI[k]
    return S, nout


@functools.lru_cache(maxsize=None)
def _build_level_matrices(H, W):
    """Merged per-level DWT/IDWT matrices, padded to 128-lane boundaries.

    ana_big[j]: (pad_in_j, 4*P_j)  with column blocks [LL | k0 | k1 | k2],
                each block zero-padded to P_j = pad128(hw_{j+1}) lanes.
    syn_big[j]: (pad_ll_in_j + 3*P_j, pad128(rec_hw_j)) with row blocks
                [LL | k0 | k1 | k2]; the crop of the incoming LL (and every
                padding row/column) is folded in as zero rows/cols.
    Band order k: 0=(hband=1,wband=0), 1=(hband=0,wband=1), 2=(hband=1,wband=1).
    """
    hs, ws = [H], [W]
    ana_blocks = []
    for _ in range(J):
        h, w = hs[-1], ws[-1]
        A_h, hout = _analysis_matrix(h)
        A_w, wout = _analysis_matrix(w)
        K = np.kron(A_h, A_w).reshape(h * w, 2, hout, 2, wout)
        ana_blocks.append((
            K[:, 0, :, 0, :].reshape(h * w, hout * wout),    # LL
            K[:, 1, :, 0, :].reshape(h * w, hout * wout),    # k=0
            K[:, 0, :, 1, :].reshape(h * w, hout * wout),    # k=1
            K[:, 1, :, 1, :].reshape(h * w, hout * wout)))   # k=2
        hs.append(hout)
        ws.append(wout)

    hw = [hs[i] * ws[i] for i in range(J + 1)]
    pad_band = [_pad128(hw[j + 1]) for j in range(J)]
    pad_in = [_pad128(hw[0])] + pad_band[:J - 1]

    ana_big = []
    for j in range(J):
        A = np.zeros((pad_in[j], 4 * pad_band[j]), dtype=np.float32)
        for k in range(4):
            A[:hw[j], k * pad_band[j]:k * pad_band[j] + hw[j + 1]] = ana_blocks[j][k]
        ana_big.append(A)

    syn_big = [None] * J
    pad_rec = [None] * J
    ll_h, ll_w = hs[J], ws[J]                 # grid of the incoming LL branch
    pad_ll_in = pad_band[J - 1]               # its padded lane width
    for j in range(J - 1, -1, -1):
        hin, win = hs[j + 1], ws[j + 1]
        S_h, hrec = _synthesis_matrix(hin)
        S_w, wrec = _synthesis_matrix(win)
        K = np.kron(S_h, S_w).reshape(2, hin, 2, win, hrec * wrec)
        rec = hrec * wrec
        pad_rec[j] = _pad128(rec)
        S = np.zeros((pad_ll_in + 3 * pad_band[j], pad_rec[j]), dtype=np.float32)
        ll_blk = K[0, :, 0, :, :].reshape(hin * win, rec)
        # Fold the (<=1 row/col) crop of the incoming LL into zero rows.
        for r in range(hin):
            S[r * ll_w:r * ll_w + win, :rec] = ll_blk[r * win:(r + 1) * win, :]
        hi = (K[1, :, 0, :, :], K[0, :, 1, :, :], K[1, :, 1, :, :])
        for k in range(3):
            off = pad_ll_in + k * pad_band[j]
            S[off:off + hin * win, :rec] = hi[k].reshape(hin * win, rec)
        syn_big[j] = S
        ll_h, ll_w = hrec, wrec
        pad_ll_in = pad_rec[j]
    return tuple(ana_big), tuple(syn_big), tuple(hs), tuple(ws)


# ------------------------------ fused kernel -------------------------------

def _wave_transform_kernel(*refs):
    (x_ref, c1m, c1b, c2m, c2b, llm, llb, sbm, sbb) = refs[:9]
    ana = refs[9:9 + J]
    syn = refs[9 + J:9 + 2 * J]
    o_ref = refs[9 + 2 * J]

    def lrelu(v):
        return jnp.maximum(v, NEG_SLOPE * v)

    def dot(a, b):
        return jnp.dot(a, b, preferred_element_type=jnp.float32)

    M = c1m.shape[0]                                   # Bblk * Cmid

    x = x_ref[...]                                     # (Bblk*Cin, HWp)
    x1 = lrelu(dot(c1m[...], x) + c1b[...])            # conv1 + LeakyReLU -> (M, HWp)

    # ---- forward DWT: ONE band-blocked right-matmul per level ----
    ll = x1
    highs = []
    for j in range(J):
        P = ana[j].shape[1] // 4                       # padded band width
        y = dot(ll, ana[j][...])                       # (M, 4P) = [LL|k0|k1|k2]
        ll = y[:, :P]
        highs.append(jnp.concatenate(                  # bands stacked on sublanes
            [y[:, P:2 * P], y[:, 2 * P:3 * P], y[:, 3 * P:4 * P]], axis=0))

    # ---- LL branch 1x1 conv (block-diag over batch) + LeakyReLU ----
    ll = lrelu(dot(llm[...], ll) + llb[...])

    # ---- inverse DWT: per level one subband-conv matmul + one synthesis ----
    for j in range(J - 1, -1, -1):
        sc = lrelu(dot(sbm[...], highs[j]) + sbb[...])             # (3M, P_j)
        coeff = jnp.concatenate(                                    # K-concat
            [ll, sc[:M], sc[M:2 * M], sc[2 * M:3 * M]], axis=1)
        ll = dot(coeff, syn[j][...])                                # (M, pad_rec_j)

    # ---- residual add + conv2 (no activation) ----
    o_ref[...] = dot(c2m[...], x1 + ll) + c2b[...]


def _const_idx(b):
    return (0, 0)


@jax.jit
def wave_transform(x, params):
    B, Cin, H, W = x.shape
    Cmid = Cin // 3
    HW = H * W
    HWp = _pad128(HW)

    # Fold batch into the matmul M dim: smallest batch block with M >= 8
    # (fills the f32 sublanes of the MXU); remaining blocks become grid steps.
    Bblk = B
    for d in range(1, B + 1):
        if B % d == 0 and d * Cmid >= 8:
            Bblk = d
            break
    BB = B // Bblk
    M = Bblk * Cmid

    ana_np, syn_np, hs, ws = _build_level_matrices(H, W)
    assert 2 * hs[1] - _L + 2 == H and 2 * ws[1] - _L + 2 == W, \
        "WaveTransform requires even H, W (IDWT output must match input size)"

    eye = jnp.eye(Bblk, dtype=jnp.float32)

    # 1x1 convs as block-diagonal (over batch) matrices; biases tiled to match.
    c1m = jnp.kron(eye, params['conv1_w'])                       # (M, Bblk*Cin)
    c1b = jnp.tile(params['conv1_b'].reshape(Cmid, 1), (Bblk, 1))
    c2m = jnp.kron(eye, params['conv2_w'])                       # (Bblk*Cin, M)
    c2b = jnp.tile(params['conv2_b'].reshape(Cin, 1), (Bblk, 1))
    llm = jnp.kron(eye, params['w_ll'])                          # (M, M)
    llb = jnp.tile(params['b_ll'].reshape(Cmid, 1), (Bblk, 1))
    # Subband conv regrouped to (band, batch, channel) row/col ordering so the
    # three sublane-stacked bands are mixed by ONE left-matmul per level.
    w_kc = params['w_sb'].reshape(Cmid, 3, Cmid, 3).transpose(1, 0, 3, 2)
    sbm = jnp.einsum('xuyv,bd->xbuydv', w_kc, eye).reshape(3 * M, 3 * M)
    sbb = jnp.tile(params['b_sb'].reshape(Cmid, 3).T[:, None, :],
                   (1, Bblk, 1)).reshape(3 * M, 1)

    xw = x.reshape(B, Cin, HW).astype(jnp.float32)
    if HWp != HW:
        xw = jnp.pad(xw, ((0, 0), (0, 0), (0, HWp - HW)))
    xw = xw.reshape(BB, Bblk * Cin, HWp)

    ops = ([xw, c1m, c1b, c2m, c2b, llm, llb, sbm, sbb]
           + [jnp.asarray(a) for a in ana_np]
           + [jnp.asarray(s) for s in syn_np])

    in_specs = [pl.BlockSpec((None, Bblk * Cin, HWp), lambda b: (b, 0, 0))]
    for op in ops[1:]:
        # Constant operands (weights / filter matrices): fetched once,
        # constant index map.  (For very large H,W consider pl.Buffered(1).)
        in_specs.append(pl.BlockSpec(op.shape, _const_idx))

    # Advisory cost estimate: all in-kernel matmuls + operand/output bytes.
    mkn = [(M, Bblk * Cin, HWp), (Bblk * Cin, M, HWp),
           (M, M, ana_np[J - 1].shape[1] // 4)]
    for j in range(J):
        mkn.append((M, ana_np[j].shape[0], ana_np[j].shape[1]))
        mkn.append((3 * M, 3 * M, ana_np[j].shape[1] // 4))
        mkn.append((M, syn_np[j].shape[0], syn_np[j].shape[1]))
    flops = 2 * BB * sum(m * k * n for (m, k, n) in mkn)
    bytes_accessed = (sum(int(np.prod(o.shape)) * 4 for o in ops)
                      + BB * Bblk * Cin * HWp * 4)

    out = pl.pallas_call(
        _wave_transform_kernel,
        out_shape=jax.ShapeDtypeStruct((BB, Bblk * Cin, HWp), jnp.float32),
        grid=(BB,),
        in_specs=in_specs,
        out_specs=pl.BlockSpec((None, Bblk * Cin, HWp), lambda b: (b, 0, 0)),
        compiler_params=pltpu.CompilerParams(
            dimension_semantics=("parallel",)),
        cost_estimate=pl.CostEstimate(
            flops=int(flops), transcendentals=0,
            bytes_accessed=int(bytes_accessed)),
    )(*ops)

    return out.reshape(B, Cin, HWp)[:, :, :HW].reshape(B, Cin, H, W)


# --------------------- plain-JAX reference (for testing) -------------------

def _reference_wave_transform(x, params):
    """Separable per-axis reference mirroring pytorch_wavelets AFB2D/SFB2D."""
    B, Cin, H, W = x.shape
    Cmid = Cin // 3

    def lrelu(v):
        return jnp.where(v >= 0.0, v, NEG_SLOPE * v)

    def conv1x1(w, b, t):
        return jnp.einsum('oc,bchw->bohw', w, t) + b[None, :, None, None]

    x1 = lrelu(conv1x1(params['conv1_w'], params['conv1_b'], x))

    ll = x1
    highs = []
    for _ in range(J):
        _, _, h, w = ll.shape
        A_h, hout = _analysis_matrix(h)
        A_w, wout = _analysis_matrix(w)
        A_h = jnp.asarray(A_h.astype(np.float32))
        A_w = jnp.asarray(A_w.astype(np.float32))
        r = jnp.einsum('bchw,wk->bchk', ll, A_w)
        y = jnp.einsum('bchk,hm->bcmk', r, A_h).reshape(B, Cmid, 2, hout, 2, wout)
        ll = y[:, :, 0, :, 0, :]
        highs.append(jnp.stack([y[:, :, 1, :, 0, :],
                                y[:, :, 0, :, 1, :],
                                y[:, :, 1, :, 1, :]], axis=2))

    cA = lrelu(conv1x1(params['w_ll'], params['b_ll'], ll))

    subs = []
    for hb in highs:
        b_, c_, k_, hh, ww = hb.shape
        sc = lrelu(conv1x1(params['w_sb'], params['b_sb'],
                           hb.reshape(b_, c_ * k_, hh, ww)))
        subs.append(sc.reshape(b_, c_, k_, hh, ww))

    ll = cA
    for j in range(J - 1, -1, -1):
        hb = subs[j]
        if ll.shape[-2] > hb.shape[-2]:
            ll = ll[..., :-1, :]
        if ll.shape[-1] > hb.shape[-1]:
            ll = ll[..., :-1]
        _, _, h, w = ll.shape
        S_h, _ = _synthesis_matrix(h)
        S_w, _ = _synthesis_matrix(w)
        S_h = jnp.asarray(S_h.astype(np.float32))
        S_w = jnp.asarray(S_w.astype(np.float32))
        coeff = jnp.concatenate(
            [jnp.concatenate([ll, hb[:, :, 1]], axis=3),
             jnp.concatenate([hb[:, :, 0], hb[:, :, 2]], axis=3)], axis=2)
        t = jnp.einsum('bcrs,rp->bcps', coeff, S_h)
        ll = jnp.einsum('bcps,sq->bcpq', t, S_w)

    return conv1x1(params['conv2_w'], params['conv2_b'], x1 + ll)


if __name__ == "__main__":
    key = jax.random.PRNGKey(0)
    ks = jax.random.split(key, 9)

    B, S = 2, 16
    Cin, Cmid = EMBED_DIM, EMBED_DIM // 3
    x = jax.random.normal(ks[0], (B, Cin, S, S), dtype=jnp.float32)

    # Deterministic synthetic parameters (Conv2d 1x1 weights squeezed to 2-D).
    params = {
        'conv1_w': 0.1 * jax.random.normal(ks[1], (Cmid, Cin), dtype=jnp.float32),
        'conv1_b': 0.1 * jax.random.normal(ks[2], (Cmid,), dtype=jnp.float32),
        'w_ll':    0.1 * jax.random.normal(ks[3], (Cmid, Cmid), dtype=jnp.float32),
        'b_ll':    0.1 * jax.random.normal(ks[4], (Cmid,), dtype=jnp.float32),
        'w_sb':    0.1 * jax.random.normal(ks[5], (3 * Cmid, 3 * Cmid), dtype=jnp.float32),
        'b_sb':    0.1 * jax.random.normal(ks[6], (3 * Cmid,), dtype=jnp.float32),
        'conv2_w': 0.1 * jax.random.normal(ks[7], (Cin, Cmid), dtype=jnp.float32),
        'conv2_b': 0.1 * jax.random.normal(ks[8], (Cin,), dtype=jnp.float32),
    }

    out = jax.block_until_ready(wave_transform(x, params))
    assert out.shape == x.shape, (out.shape, x.shape)
    assert bool(jnp.all(jnp.isfinite(out)))

    # Cross-check the fused Pallas kernel against the plain-JAX reference.
    ref = _reference_wave_transform(x, params)
    err = float(jnp.max(jnp.abs(out - ref)))
    scale = float(jnp.max(jnp.abs(ref)))
    assert err <= 5e-2 * max(scale, 1.0), (err, scale)

    print("KERNEL_OK")
</pallas_src>

<mosaic_0001>
module attributes {stable_mosaic.version = 11 : i64} {
  func.func @_wave_transform_kernel(%arg0: i32, %arg1: memref<1x24x256xf32, #tpu.memory_space<vmem>>, %arg2: memref<8x24xf32, #tpu.memory_space<vmem>>, %arg3: memref<8x1xf32, #tpu.memory_space<vmem>>, %arg4: memref<24x8xf32, #tpu.memory_space<vmem>>, %arg5: memref<24x1xf32, #tpu.memory_space<vmem>>, %arg6: memref<8x8xf32, #tpu.memory_space<vmem>>, %arg7: memref<8x1xf32, #tpu.memory_space<vmem>>, %arg8: memref<24x24xf32, #tpu.memory_space<vmem>>, %arg9: memref<24x1xf32, #tpu.memory_space<vmem>>, %arg10: memref<256x512xf32, #tpu.memory_space<vmem>>, %arg11: memref<128x512xf32, #tpu.memory_space<vmem>>, %arg12: memref<128x512xf32, #tpu.memory_space<vmem>>, %arg13: memref<128x512xf32, #tpu.memory_space<vmem>>, %arg14: memref<640x256xf32, #tpu.memory_space<vmem>>, %arg15: memref<512x256xf32, #tpu.memory_space<vmem>>, %arg16: memref<512x128xf32, #tpu.memory_space<vmem>>, %arg17: memref<512x128xf32, #tpu.memory_space<vmem>>, %arg18: memref<1x24x256xf32, #tpu.memory_space<vmem>>) attributes {dimension_semantics = [#tpu.dimension_semantics<parallel>], iteration_bounds = array<i64: 1>, scalar_prefetch = 0 : i64, scratch_operands = 0 : i64, tpu.core_type = #tpu.core_type<tc>, window_params = [{transform_indices = @transform_0, window_bounds = array<i64: 1, 24, 256>}, {pipeline_mode = #tpu.pipeline_mode<synchronous>, transform_indices = @transform_1, window_bounds = array<i64: 8, 24>}, {pipeline_mode = #tpu.pipeline_mode<synchronous>, transform_indices = @transform_2, window_bounds = array<i64: 8, 1>}, {pipeline_mode = #tpu.pipeline_mode<synchronous>, transform_indices = @transform_3, window_bounds = array<i64: 24, 8>}, {pipeline_mode = #tpu.pipeline_mode<synchronous>, transform_indices = @transform_4, window_bounds = array<i64: 24, 1>}, {pipeline_mode = #tpu.pipeline_mode<synchronous>, transform_indices = @transform_5, window_bounds = array<i64: 8, 8>}, {pipeline_mode = #tpu.pipeline_mode<synchronous>, transform_indices = @transform_6, window_bounds = array<i64: 8, 1>}, {pipeline_mode = #tpu.pipeline_mode<synchronous>, transform_indices = @transform_7, window_bounds = array<i64: 24, 24>}, {pipeline_mode = #tpu.pipeline_mode<synchronous>, transform_indices = @transform_8, window_bounds = array<i64: 24, 1>}, {pipeline_mode = #tpu.pipeline_mode<synchronous>, transform_indices = @transform_9, window_bounds = array<i64: 256, 512>}, {pipeline_mode = #tpu.pipeline_mode<synchronous>, transform_indices = @transform_10, window_bounds = array<i64: 128, 512>}, {pipeline_mode = #tpu.pipeline_mode<synchronous>, transform_indices = @transform_11, window_bounds = array<i64: 128, 512>}, {pipeline_mode = #tpu.pipeline_mode<synchronous>, transform_indices = @transform_12, window_bounds = array<i64: 128, 512>}, {pipeline_mode = #tpu.pipeline_mode<synchronous>, transform_indices = @transform_13, window_bounds = array<i64: 640, 256>}, {pipeline_mode = #tpu.pipeline_mode<synchronous>, transform_indices = @transform_14, window_bounds = array<i64: 512, 256>}, {pipeline_mode = #tpu.pipeline_mode<synchronous>, transform_indices = @transform_15, window_bounds = array<i64: 512, 128>}, {pipeline_mode = #tpu.pipeline_mode<synchronous>, transform_indices = @transform_16, window_bounds = array<i64: 512, 128>}, {transform_indices = @transform_17, window_bounds = array<i64: 1, 24, 256>}]} {
    %c0 = arith.constant 0 : index
    %c0_0 = arith.constant 0 : index
    %c0_1 = arith.constant 0 : index
    %0 = vector.load %arg1[%c0, %c0_0, %c0_1] : memref<1x24x256xf32, #tpu.memory_space<vmem>>, vector<1x24x256xf32>
    %1 = vector.shape_cast %0 : vector<1x24x256xf32> to vector<24x256xf32>
    %c0_2 = arith.constant 0 : index
    %c0_3 = arith.constant 0 : index
    %2 = vector.load %arg2[%c0_2, %c0_3] : memref<8x24xf32, #tpu.memory_space<vmem>>, vector<8x24xf32>
    %cst = arith.constant dense<0.000000e+00> : vector<8x256xf32>
    %3 = tpu.matmul %2, %1, %cst {dimension_numbers = #tpu.dot_dimension_numbers<[1], [0], [0], [1], [0, 0, 1, 1], [], []>} : vector<8x24xf32>, vector<24x256xf32>, vector<8x256xf32> -> vector<8x256xf32>
    %c0_4 = arith.constant 0 : index
    %c0_5 = arith.constant 0 : index
    %4 = vector.load %arg3[%c0_4, %c0_5] : memref<8x1xf32, #tpu.memory_space<vmem>>, vector<8x1xf32>
    %5 = vector.broadcast %4 : vector<8x1xf32> to vector<8x256xf32>
    %6 = arith.addf %3, %5 : vector<8x256xf32>
    %cst_6 = arith.constant 2.000000e-01 : f32
    %7 = vector.broadcast %cst_6 : f32 to vector<8x256xf32>
    %8 = arith.mulf %7, %6 : vector<8x256xf32>
    %9 = arith.maximumf %6, %8 : vector<8x256xf32>
    %c0_7 = arith.constant 0 : index
    %c0_8 = arith.constant 0 : index
    %10 = vector.load %arg10[%c0_7, %c0_8] : memref<256x512xf32, #tpu.memory_space<vmem>>, vector<256x512xf32>
    %cst_9 = arith.constant dense<0.000000e+00> : vector<8x512xf32>
    %11 = tpu.matmul %9, %10, %cst_9 {dimension_numbers = #tpu.dot_dimension_numbers<[1], [0], [0], [1], [0, 0, 1, 1], [], []>} : vector<8x256xf32>, vector<256x512xf32>, vector<8x512xf32> -> vector<8x512xf32>
    %12 = vector.extract_strided_slice %11 {offsets = [0, 0], sizes = [8, 128], strides = [1, 1]} : vector<8x512xf32> to vector<8x128xf32>
    %13 = vector.extract_strided_slice %11 {offsets = [0, 128], sizes = [8, 128], strides = [1, 1]} : vector<8x512xf32> to vector<8x128xf32>
    %14 = vector.extract_strided_slice %11 {offsets = [0, 256], sizes = [8, 128], strides = [1, 1]} : vector<8x512xf32> to vector<8x128xf32>
    %15 = vector.extract_strided_slice %11 {offsets = [0, 384], sizes = [8, 128], strides = [1, 1]} : vector<8x512xf32> to vector<8x128xf32>
    %16 = tpu.concatenate %13, %14, %15 in 0 : vector<8x128xf32>, vector<8x128xf32>, vector<8x128xf32> -> vector<24x128xf32>
    %c0_10 = arith.constant 0 : index
    %c0_11 = arith.constant 0 : index
    %17 = vector.load %arg11[%c0_10, %c0_11] : memref<128x512xf32, #tpu.memory_space<vmem>>, vector<128x512xf32>
    %cst_12 = arith.constant dense<0.000000e+00> : vector<8x512xf32>
    %18 = tpu.matmul %12, %17, %cst_12 {dimension_numbers = #tpu.dot_dimension_numbers<[1], [0], [0], [1], [0, 0, 1, 1], [], []>} : vector<8x128xf32>, vector<128x512xf32>, vector<8x512xf32> -> vector<8x512xf32>
    %19 = vector.extract_strided_slice %18 {offsets = [0, 0], sizes = [8, 128], strides = [1, 1]} : vector<8x512xf32> to vector<8x128xf32>
    %20 = vector.extract_strided_slice %18 {offsets = [0, 128], sizes = [8, 128], strides = [1, 1]} : vector<8x512xf32> to vector<8x128xf32>
    %21 = vector.extract_strided_slice %18 {offsets = [0, 256], sizes = [8, 128], strides = [1, 1]} : vector<8x512xf32> to vector<8x128xf32>
    %22 = vector.extract_strided_slice %18 {offsets = [0, 384], sizes = [8, 128], strides = [1, 1]} : vector<8x512xf32> to vector<8x128xf32>
    %23 = tpu.concatenate %20, %21, %22 in 0 : vector<8x128xf32>, vector<8x128xf32>, vector<8x128xf32> -> vector<24x128xf32>
    %c0_13 = arith.constant 0 : index
    %c0_14 = arith.constant 0 : index
    %24 = vector.load %arg12[%c0_13, %c0_14] : memref<128x512xf32, #tpu.memory_space<vmem>>, vector<128x512xf32>
    %cst_15 = arith.constant dense<0.000000e+00> : vector<8x512xf32>
    %25 = tpu.matmul %19, %24, %cst_15 {dimension_numbers = #tpu.dot_dimension_numbers<[1], [0], [0], [1], [0, 0, 1, 1], [], []>} : vector<8x128xf32>, vector<128x512xf32>, vector<8x512xf32> -> vector<8x512xf32>
    %26 = vector.extract_strided_slice %25 {offsets = [0, 0], sizes = [8, 128], strides = [1, 1]} : vector<8x512xf32> to vector<8x128xf32>
    %27 = vector.extract_strided_slice %25 {offsets = [0, 128], sizes = [8, 128], strides = [1, 1]} : vector<8x512xf32> to vector<8x128xf32>
    %28 = vector.extract_strided_slice %25 {offsets = [0, 256], sizes = [8, 128], strides = [1, 1]} : vector<8x512xf32> to vector<8x128xf32>
    %29 = vector.extract_strided_slice %25 {offsets = [0, 384], sizes = [8, 128], strides = [1, 1]} : vector<8x512xf32> to vector<8x128xf32>
    %30 = tpu.concatenate %27, %28, %29 in 0 : vector<8x128xf32>, vector<8x128xf32>, vector<8x128xf32> -> vector<24x128xf32>
    %c0_16 = arith.constant 0 : index
    %c0_17 = arith.constant 0 : index
    %31 = vector.load %arg13[%c0_16, %c0_17] : memref<128x512xf32, #tpu.memory_space<vmem>>, vector<128x512xf32>
    %cst_18 = arith.constant dense<0.000000e+00> : vector<8x512xf32>
    %32 = tpu.matmul %26, %31, %cst_18 {dimension_numbers = #tpu.dot_dimension_numbers<[1], [0], [0], [1], [0, 0, 1, 1], [], []>} : vector<8x128xf32>, vector<128x512xf32>, vector<8x512xf32> -> vector<8x512xf32>
    %33 = vector.extract_strided_slice %32 {offsets = [0, 0], sizes = [8, 128], strides = [1, 1]} : vector<8x512xf32> to vector<8x128xf32>
    %34 = vector.extract_strided_slice %32 {offsets = [0, 128], sizes = [8, 128], strides = [1, 1]} : vector<8x512xf32> to vector<8x128xf32>
    %35 = vector.extract_strided_slice %32 {offsets = [0, 256], sizes = [8, 128], strides = [1, 1]} : vector<8x512xf32> to vector<8x128xf32>
    %36 = vector.extract_strided_slice %32 {offsets = [0, 384], sizes = [8, 128], strides = [1, 1]} : vector<8x512xf32> to vector<8x128xf32>
    %37 = tpu.concatenate %34, %35, %36 in 0 : vector<8x128xf32>, vector<8x128xf32>, vector<8x128xf32> -> vector<24x128xf32>
    %c0_19 = arith.constant 0 : index
    %c0_20 = arith.constant 0 : index
    %38 = vector.load %arg6[%c0_19, %c0_20] : memref<8x8xf32, #tpu.memory_space<vmem>>, vector<8x8xf32>
    %cst_21 = arith.constant dense<0.000000e+00> : vector<8x128xf32>
    %39 = tpu.matmul %38, %33, %cst_21 {dimension_numbers = #tpu.dot_dimension_numbers<[1], [0], [0], [1], [0, 0, 1, 1], [], []>} : vector<8x8xf32>, vector<8x128xf32>, vector<8x128xf32> -> vector<8x128xf32>
    %c0_22 = arith.constant 0 : index
    %c0_23 = arith.constant 0 : index
    %40 = vector.load %arg7[%c0_22, %c0_23] : memref<8x1xf32, #tpu.memory_space<vmem>>, vector<8x1xf32>
    %41 = vector.broadcast %40 : vector<8x1xf32> to vector<8x128xf32>
    %42 = arith.addf %39, %41 : vector<8x128xf32>
    %cst_24 = arith.constant 2.000000e-01 : f32
    %43 = vector.broadcast %cst_24 : f32 to vector<8x128xf32>
    %44 = arith.mulf %43, %42 : vector<8x128xf32>
    %45 = arith.maximumf %42, %44 : vector<8x128xf32>
    %c0_25 = arith.constant 0 : index
    %c0_26 = arith.constant 0 : index
    %46 = vector.load %arg8[%c0_25, %c0_26] : memref<24x24xf32, #tpu.memory_space<vmem>>, vector<24x24xf32>
    %cst_27 = arith.constant dense<0.000000e+00> : vector<24x128xf32>
    %47 = tpu.matmul %46, %37, %cst_27 {dimension_numbers = #tpu.dot_dimension_numbers<[1], [0], [0], [1], [0, 0, 1, 1], [], []>} : vector<24x24xf32>, vector<24x128xf32>, vector<24x128xf32> -> vector<24x128xf32>
    %c0_28 = arith.constant 0 : index
    %c0_29 = arith.constant 0 : index
    %48 = vector.load %arg9[%c0_28, %c0_29] : memref<24x1xf32, #tpu.memory_space<vmem>>, vector<24x1xf32>
    %49 = vector.broadcast %48 : vector<24x1xf32> to vector<24x128xf32>
    %50 = arith.addf %47, %49 : vector<24x128xf32>
    %cst_30 = arith.constant 2.000000e-01 : f32
    %51 = vector.broadcast %cst_30 : f32 to vector<24x128xf32>
    %52 = arith.mulf %51, %50 : vector<24x128xf32>
    %53 = arith.maximumf %50, %52 : vector<24x128xf32>
    %54 = vector.extract_strided_slice %53 {offsets = [0, 0], sizes = [8, 128], strides = [1, 1]} : vector<24x128xf32> to vector<8x128xf32>
    %55 = vector.extract_strided_slice %53 {offsets = [8, 0], sizes = [8, 128], strides = [1, 1]} : vector<24x128xf32> to vector<8x128xf32>
    %56 = vector.extract_strided_slice %53 {offsets = [16, 0], sizes = [8, 128], strides = [1, 1]} : vector<24x128xf32> to vector<8x128xf32>
    %57 = tpu.concatenate %45, %54, %55, %56 in 1 : vector<8x128xf32>, vector<8x128xf32>, vector<8x128xf32>, vector<8x128xf32> -> vector<8x512xf32>
    %c0_31 = arith.constant 0 : index
    %c0_32 = arith.constant 0 : index
    %58 = vector.load %arg17[%c0_31, %c0_32] : memref<512x128xf32, #tpu.memory_space<vmem>>, vector<512x128xf32>
    %cst_33 = arith.constant dense<0.000000e+00> : vector<8x128xf32>
    %59 = tpu.matmul %57, %58, %cst_33 {dimension_numbers = #tpu.dot_dimension_numbers<[1], [0], [0], [1], [0, 0, 1, 1], [], []>} : vector<8x512xf32>, vector<512x128xf32>, vector<8x128xf32> -> vector<8x128xf32>
    %c0_34 = arith.constant 0 : index
    %c0_35 = arith.constant 0 : index
    %60 = vector.load %arg8[%c0_34, %c0_35] : memref<24x24xf32, #tpu.memory_space<vmem>>, vector<24x24xf32>
    %cst_36 = arith.constant dense<0.000000e+00> : vector<24x128xf32>
    %61 = tpu.matmul %60, %30, %cst_36 {dimension_numbers = #tpu.dot_dimension_numbers<[1], [0], [0], [1], [0, 0, 1, 1], [], []>} : vector<24x24xf32>, vector<24x128xf32>, vector<24x128xf32> -> vector<24x128xf32>
    %c0_37 = arith.constant 0 : index
    %c0_38 = arith.constant 0 : index
    %62 = vector.load %arg9[%c0_37, %c0_38] : memref<24x1xf32, #tpu.memory_space<vmem>>, vector<24x1xf32>
    %63 = vector.broadcast %62 : vector<24x1xf32> to vector<24x128xf32>
    %64 = arith.addf %61, %63 : vector<24x128xf32>
    %cst_39 = arith.constant 2.000000e-01 : f32
    %65 = vector.broadcast %cst_39 : f32 to vector<24x128xf32>
    %66 = arith.mulf %65, %64 : vector<24x128xf32>
    %67 = arith.maximumf %64, %66 : vector<24x128xf32>
    %68 = vector.extract_strided_slice %67 {offsets = [0, 0], sizes = [8, 128], strides = [1, 1]} : vector<24x128xf32> to vector<8x128xf32>
    %69 = vector.extract_strided_slice %67 {offsets = [8, 0], sizes = [8, 128], strides = [1, 1]} : vector<24x128xf32> to vector<8x128xf32>
    %70 = vector.extract_strided_slice %67 {offsets = [16, 0], sizes = [8, 128], strides = [1, 1]} : vector<24x128xf32> to vector<8x128xf32>
    %71 = tpu.concatenate %59, %68, %69, %70 in 1 : vector<8x128xf32>, vector<8x128xf32>, vector<8x128xf32>, vector<8x128xf32> -> vector<8x512xf32>
    %c0_40 = arith.constant 0 : index
    %c0_41 = arith.constant 0 : index
    %72 = vector.load %arg16[%c0_40, %c0_41] : memref<512x128xf32, #tpu.memory_space<vmem>>, vector<512x128xf32>
    %cst_42 = arith.constant dense<0.000000e+00> : vector<8x128xf32>
    %73 = tpu.matmul %71, %72, %cst_42 {dimension_numbers = #tpu.dot_dimension_numbers<[1], [0], [0], [1], [0, 0, 1, 1], [], []>} : vector<8x512xf32>, vector<512x128xf32>, vector<8x128xf32> -> vector<8x128xf32>
    %c0_43 = arith.constant 0 : index
    %c0_44 = arith.constant 0 : index
    %74 = vector.load %arg8[%c0_43, %c0_44] : memref<24x24xf32, #tpu.memory_space<vmem>>, vector<24x24xf32>
    %cst_45 = arith.constant dense<0.000000e+00> : vector<24x128xf32>
    %75 = tpu.matmul %74, %23, %cst_45 {dimension_numbers = #tpu.dot_dimension_numbers<[1], [0], [0], [1], [0, 0, 1, 1], [], []>} : vector<24x24xf32>, vector<24x128xf32>, vector<24x128xf32> -> vector<24x128xf32>
    %c0_46 = arith.constant 0 : index
    %c0_47 = arith.constant 0 : index
    %76 = vector.load %arg9[%c0_46, %c0_47] : memref<24x1xf32, #tpu.memory_space<vmem>>, vector<24x1xf32>
    %77 = vector.broadcast %76 : vector<24x1xf32> to vector<24x128xf32>
    %78 = arith.addf %75, %77 : vector<24x128xf32>
    %cst_48 = arith.constant 2.000000e-01 : f32
    %79 = vector.broadcast %cst_48 : f32 to vector<24x128xf32>
    %80 = arith.mulf %79, %78 : vector<24x128xf32>
    %81 = arith.maximumf %78, %80 : vector<24x128xf32>
    %82 = vector.extract_strided_slice %81 {offsets = [0, 0], sizes = [8, 128], strides = [1, 1]} : vector<24x128xf32> to vector<8x128xf32>
    %83 = vector.extract_strided_slice %81 {offsets = [8, 0], sizes = [8, 128], strides = [1, 1]} : vector<24x128xf32> to vector<8x128xf32>
    %84 = vector.extract_strided_slice %81 {offsets = [16, 0], sizes = [8, 128], strides = [1, 1]} : vector<24x128xf32> to vector<8x128xf32>
    %85 = tpu.concatenate %73, %82, %83, %84 in 1 : vector<8x128xf32>, vector<8x128xf32>, vector<8x128xf32>, vector<8x128xf32> -> vector<8x512xf32>
    %c0_49 = arith.constant 0 : index
    %c0_50 = arith.constant 0 : index
    %86 = vector.load %arg15[%c0_49, %c0_50] : memref<512x256xf32, #tpu.memory_space<vmem>>, vector<512x256xf32>
    %cst_51 = arith.constant dense<0.000000e+00> : vector<8x256xf32>
    %87 = tpu.matmul %85, %86, %cst_51 {dimension_numbers = #tpu.dot_dimension_numbers<[1], [0], [0], [1], [0, 0, 1, 1], [], []>} : vector<8x512xf32>, vector<512x256xf32>, vector<8x256xf32> -> vector<8x256xf32>
    %c0_52 = arith.constant 0 : index
    %c0_53 = arith.constant 0 : index
    %88 = vector.load %arg8[%c0_52, %c0_53] : memref<24x24xf32, #tpu.memory_space<vmem>>, vector<24x24xf32>
    %cst_54 = arith.constant dense<0.000000e+00> : vector<24x128xf32>
    %89 = tpu.matmul %88, %16, %cst_54 {dimension_numbers = #tpu.dot_dimension_numbers<[1], [0], [0], [1], [0, 0, 1, 1], [], []>} : vector<24x24xf32>, vector<24x128xf32>, vector<24x128xf32> -> vector<24x128xf32>
    %c0_55 = arith.constant 0 : index
    %c0_56 = arith.constant 0 : index
    %90 = vector.load %arg9[%c0_55, %c0_56] : memref<24x1xf32, #tpu.memory_space<vmem>>, vector<24x1xf32>
    %91 = vector.broadcast %90 : vector<24x1xf32> to vector<24x128xf32>
    %92 = arith.addf %89, %91 : vector<24x128xf32>
    %cst_57 = arith.constant 2.000000e-01 : f32
    %93 = vector.broadcast %cst_57 : f32 to vector<24x128xf32>
    %94 = arith.mulf %93, %92 : vector<24x128xf32>
    %95 = arith.maximumf %92, %94 : vector<24x128xf32>
    %96 = vector.extract_strided_slice %95 {offsets = [0, 0], sizes = [8, 128], strides = [1, 1]} : vector<24x128xf32> to vector<8x128xf32>
    %97 = vector.extract_strided_slice %95 {offsets = [8, 0], sizes = [8, 128], strides = [1, 1]} : vector<24x128xf32> to vector<8x128xf32>
    %98 = vector.extract_strided_slice %95 {offsets = [16, 0], sizes = [8, 128], strides = [1, 1]} : vector<24x128xf32> to vector<8x128xf32>
    %99 = tpu.concatenate %87, %96, %97, %98 in 1 : vector<8x256xf32>, vector<8x128xf32>, vector<8x128xf32>, vector<8x128xf32> -> vector<8x640xf32>
    %c0_58 = arith.constant 0 : index
    %c0_59 = arith.constant 0 : index
    %100 = vector.load %arg14[%c0_58, %c0_59] : memref<640x256xf32, #tpu.memory_space<vmem>>, vector<640x256xf32>
    %cst_60 = arith.constant dense<0.000000e+00> : vector<8x256xf32>
    %101 = tpu.matmul %99, %100, %cst_60 {dimension_numbers = #tpu.dot_dimension_numbers<[1], [0], [0], [1], [0, 0, 1, 1], [], []>} : vector<8x640xf32>, vector<640x256xf32>, vector<8x256xf32> -> vector<8x256xf32>
    %c0_61 = arith.constant 0 : index
    %c0_62 = arith.constant 0 : index
    %102 = vector.load %arg4[%c0_61, %c0_62] : memref<24x8xf32, #tpu.memory_space<vmem>>, vector<24x8xf32>
    %103 = arith.addf %9, %101 : vector<8x256xf32>
    %cst_63 = arith.constant dense<0.000000e+00> : vector<24x256xf32>
    %104 = tpu.matmul %102, %103, %cst_63 {dimension_numbers = #tpu.dot_dimension_numbers<[1], [0], [0], [1], [0, 0, 1, 1], [], []>} : vector<24x8xf32>, vector<8x256xf32>, vector<24x256xf32> -> vector<24x256xf32>
    %c0_64 = arith.constant 0 : index
    %c0_65 = arith.constant 0 : index
    %105 = vector.load %arg5[%c0_64, %c0_65] : memref<24x1xf32, #tpu.memory_space<vmem>>, vector<24x1xf32>
    %106 = vector.broadcast %105 : vector<24x1xf32> to vector<24x256xf32>
    %107 = arith.addf %104, %106 : vector<24x256xf32>
    %c0_66 = arith.constant 0 : index
    %c0_67 = arith.constant 0 : index
    %c0_68 = arith.constant 0 : index
    %108 = vector.load %arg18[%c0_66, %c0_67, %c0_68] : memref<1x24x256xf32, #tpu.memory_space<vmem>>, vector<1x24x256xf32>
    %109 = vector.shape_cast %108 : vector<1x24x256xf32> to vector<24x256xf32>
    %110 = vector.shape_cast %107 : vector<24x256xf32> to vector<1x24x256xf32>
    tpu.vector_store %arg18[%c0_66, %c0_67, %c0_68], %110 {strides = array<i32>} : memref<1x24x256xf32, #tpu.memory_space<vmem>>, vector<1x24x256xf32>,
    return
  }
  func.func @transform_0(%arg0: i32) -> (i32, i32, i32) {
    %c0_i32 = arith.constant 0 : i32
    %c0_i32_0 = arith.constant 0 : i32
    %c0_i32_1 = arith.constant 0 : i32
    return %arg0, %c0_i32, %c0_i32_0 : i32, i32, i32
  }
  func.func @transform_1(%arg0: i32) -> (i32, i32) {
    %c0_i32 = arith.constant 0 : i32
    %c0_i32_0 = arith.constant 0 : i32
    %c0_i32_1 = arith.constant 0 : i32
    return %c0_i32, %c0_i32_0 : i32, i32
  }
  func.func @transform_2(%arg0: i32) -> (i32, i32) {
    %c0_i32 = arith.constant 0 : i32
    %c0_i32_0 = arith.constant 0 : i32
    %c0_i32_1 = arith.constant 0 : i32
    return %c0_i32, %c0_i32_0 : i32, i32
  }
  func.func @transform_3(%arg0: i32) -> (i32, i32) {
    %c0_i32 = arith.constant 0 : i32
    %c0_i32_0 = arith.constant 0 : i32
    %c0_i32_1 = arith.constant 0 : i32
    return %c0_i32, %c0_i32_0 : i32, i32
  }
  func.func @transform_4(%arg0: i32) -> (i32, i32) {
    %c0_i32 = arith.constant 0 : i32
    %c0_i32_0 = arith.constant 0 : i32
    %c0_i32_1 = arith.constant 0 : i32
    return %c0_i32, %c0_i32_0 : i32, i32
  }
  func.func @transform_5(%arg0: i32) -> (i32, i32) {
    %c0_i32 = arith.constant 0 : i32
    %c0_i32_0 = arith.constant 0 : i32
    %c0_i32_1 = arith.constant 0 : i32
    return %c0_i32, %c0_i32_0 : i32, i32
  }
  func.func @transform_6(%arg0: i32) -> (i32, i32) {
    %c0_i32 = arith.constant 0 : i32
    %c0_i32_0 = arith.constant 0 : i32
    %c0_i32_1 = arith.constant 0 : i32
    return %c0_i32, %c0_i32_0 : i32, i32
  }
  func.func @transform_7(%arg0: i32) -> (i32, i32) {
    %c0_i32 = arith.constant 0 : i32
    %c0_i32_0 = arith.constant 0 : i32
    %c0_i32_1 = arith.constant 0 : i32
    return %c0_i32, %c0_i32_0 : i32, i32
  }
  func.func @transform_8(%arg0: i32) -> (i32, i32) {
    %c0_i32 = arith.constant 0 : i32
    %c0_i32_0 = arith.constant 0 : i32
    %c0_i32_1 = arith.constant 0 : i32
    return %c0_i32, %c0_i32_0 : i32, i32
  }
  func.func @transform_9(%arg0: i32) -> (i32, i32) {
    %c0_i32 = arith.constant 0 : i32
    %c0_i32_0 = arith.constant 0 : i32
    %c0_i32_1 = arith.constant 0 : i32
    return %c0_i32, %c0_i32_0 : i32, i32
  }
  func.func @transform_10(%arg0: i32) -> (i32, i32) {
    %c0_i32 = arith.constant 0 : i32
    %c0_i32_0 = arith.constant 0 : i32
    %c0_i32_1 = arith.constant 0 : i32
    return %c0_i32, %c0_i32_0 : i32, i32
  }
  func.func @transform_11(%arg0: i32) -> (i32, i32) {
    %c0_i32 = arith.constant 0 : i32
    %c0_i32_0 = arith.constant 0 : i32
    %c0_i32_1 = arith.constant 0 : i32
    return %c0_i32, %c0_i32_0 : i32, i32
  }
  func.func @transform_12(%arg0: i32) -> (i32, i32) {
    %c0_i32 = arith.constant 0 : i32
    %c0_i32_0 = arith.constant 0 : i32
    %c0_i32_1 = arith.constant 0 : i32
    return %c0_i32, %c0_i32_0 : i32, i32
  }
  func.func @transform_13(%arg0: i32) -> (i32, i32) {
    %c0_i32 = arith.constant 0 : i32
    %c0_i32_0 = arith.constant 0 : i32
    %c0_i32_1 = arith.constant 0 : i32
    return %c0_i32, %c0_i32_0 : i32, i32
  }
  func.func @transform_14(%arg0: i32) -> (i32, i32) {
    %c0_i32 = arith.constant 0 : i32
    %c0_i32_0 = arith.constant 0 : i32
    %c0_i32_1 = arith.constant 0 : i32
    return %c0_i32, %c0_i32_0 : i32, i32
  }
  func.func @transform_15(%arg0: i32) -> (i32, i32) {
    %c0_i32 = arith.constant 0 : i32
    %c0_i32_0 = arith.constant 0 : i32
    %c0_i32_1 = arith.constant 0 : i32
    return %c0_i32, %c0_i32_0 : i32, i32
  }
  func.func @transform_16(%arg0: i32) -> (i32, i32) {
    %c0_i32 = arith.constant 0 : i32
    %c0_i32_0 = arith.constant 0 : i32
    %c0_i32_1 = arith.constant 0 : i32
    return %c0_i32, %c0_i32_0 : i32, i32
  }
  func.func @transform_17(%arg0: i32) -> (i32, i32, i32) {
    %c0_i32 = arith.constant 0 : i32
    %c0_i32_0 = arith.constant 0 : i32
    %c0_i32_1 = arith.constant 0 : i32
    return %arg0, %c0_i32, %c0_i32_0 : i32, i32, i32
  }
}

</mosaic_0001>

<llo_original>
// kernel: wave_transform.1
$region0: #{wave_transform.1}
  #allocation0 [shape = 'u32[]', space=smem, size = 0x4, offset = 0x4, fixed_abs, tag = 'smem constant byte address 0x4 - core index']
  #allocation1 [shape = 'u32[72,128]{1,0:T(1,128)}', space=vmem, size = 0x9000, scoped, tag = 'internal scratch']
  %s0 = inlined_call_operand.vmem [shape: f32[1,24,256], index: 0, kind: input, shape index: {}]
  %s1 = inlined_call_operand.vmem [shape: f32[8,24], index: 1, kind: input, shape index: {}]
  %s2 = inlined_call_operand.vmem [shape: f32[8,1], index: 2, kind: input, shape index: {}]
  %s3 = inlined_call_operand.vmem [shape: f32[24,8], index: 3, kind: input, shape index: {}]
  %s4 = inlined_call_operand.vmem [shape: f32[24,1], index: 4, kind: input, shape index: {}]
  %s5 = inlined_call_operand.vmem [shape: f32[8,8], index: 5, kind: input, shape index: {}]
  %s6 = inlined_call_operand.vmem [shape: f32[8,1], index: 6, kind: input, shape index: {}]
  %s7 = inlined_call_operand.vmem [shape: f32[24,24], index: 7, kind: input, shape index: {}]
  %s8 = inlined_call_operand.vmem [shape: f32[24,1], index: 8, kind: input, shape index: {}]
  %s9 = inlined_call_operand.hbm [shape: f32[256,512], index: 9, kind: input, shape index: {}]
  %s10 = inlined_call_operand.hbm [shape: f32[128,512], index: 10, kind: input, shape index: {}]
  %s11 = inlined_call_operand.hbm [shape: f32[128,512], index: 11, kind: input, shape index: {}]
  %s12 = inlined_call_operand.hbm [shape: f32[128,512], index: 12, kind: input, shape index: {}]
  %s13 = inlined_call_operand.hbm [shape: f32[640,256], index: 13, kind: input, shape index: {}]
  %s14 = inlined_call_operand.vmem [shape: f32[512,256], index: 14, kind: input, shape index: {}]
  %s15 = inlined_call_operand.hbm [shape: f32[512,128], index: 15, kind: input, shape index: {}]
  %s16 = inlined_call_operand.hbm [shape: f32[512,128], index: 16, kind: input, shape index: {}]
  %s17 = inlined_call_operand.vmem [shape: f32[1,24,256], index: 17, kind: output, shape index: {}]
  %s18 = sld [smem:[#allocation0]]
  $region106: #{wave_transform.1} parent=0
    _
  %s20 = ssub.s32 1, %s18
  %s21 = scalar_select 0, %s20, %s18
  $region1: #{wave_transform.1} parent=0
    #allocation2 [shape = 'u8[524288]{0}', space=vmem, size = 0x80000, scoped, tag = 'input window, operand 9, single buffered']
    #allocation3 [shape = 's32[1]{0}', space=sflag, size = 0x4, scoped, tag = 'scoped memory for wave_transform.1']
    #allocation4 [shape = 'u8[262144]{0}', space=vmem, size = 0x40000, scoped, tag = 'input window, operand 10, single buffered']
    #allocation5 [shape = 's32[1]{0}', space=sflag, size = 0x4, scoped, tag = 'scoped memory for wave_transform.1']
    #allocation6 [shape = 'u8[262144]{0}', space=vmem, size = 0x40000, scoped, tag = 'input window, operand 11, single buffered']
    #allocation7 [shape = 'u8[262144]{0}', space=vmem, size = 0x40000, scoped, tag = 'input window, operand 12, single buffered']
    #allocation8 [shape = 's32[1]{0}', space=sflag, size = 0x4, scoped, tag = 'scoped memory for wave_transform.1']
    #allocation9 [shape = 'u8[655360]{0}', space=vmem, size = 0xa0000, scoped, tag = 'input window, operand 13, single buffered']
    #allocation10 [shape = 'u8[262144]{0}', space=vmem, size = 0x40000, scoped, tag = 'input window, operand 15, single buffered']
    #allocation11 [shape = 's32[1]{0}', space=sflag, size = 0x4, scoped, tag = 'scoped memory for wave_transform.1']
    #allocation12 [shape = 'u8[262144]{0}', space=vmem, size = 0x40000, scoped, tag = 'input window, operand 16, single buffered']
    %22 = vsyncpa [#allocation3], 0
    %23 = vsyncpa [#allocation5], 0
    %24 = vsyncpa [#allocation8], 0
    %25 = vsyncpa [#allocation11], 0
    // Predicated region
    $region2: #{wave_transform.1} parent=1 // pred_check
      _
    $region3: #{wave_transform.1} parent=1 // pred_check_branch
      %27 = sbr.rel (0) target = $region5
    $region4: #{wave_transform.1} parent=1 // pred_region
      _
    $region5: #{wave_transform.1} parent=1 // pred_fallthru
      _
    // Predicated region
    $region6: #{wave_transform.1} parent=1 // pred_check
      _
    $region7: #{wave_transform.1} parent=1 // pred_check_branch
      %29 = sbr.rel (0) target = $region9
    $region8: #{wave_transform.1} parent=1 // pred_region
      _
    $region9: #{wave_transform.1} parent=1 // pred_fallthru
      _
    // Predicated region
    $region10: #{wave_transform.1} parent=1 // pred_check
      _
    $region11: #{wave_transform.1} parent=1 // pred_check_branch
      %31 = sbr.rel (0) target = $region13
    $region12: #{wave_transform.1} parent=1 // pred_region
      _
    $region13: #{wave_transform.1} parent=1 // pred_fallthru
      _
    // Predicated region
    $region14: #{wave_transform.1} parent=1 // pred_check
      _
    $region15: #{wave_transform.1} parent=1 // pred_check_branch
      %33 = sbr.rel (0) target = $region17
    $region16: #{wave_transform.1} parent=1 // pred_region
      _
    $region17: #{wave_transform.1} parent=1 // pred_fallthru
      _
    // Predicated region
    $region18: #{wave_transform.1} parent=1 // pred_check
      _
    $region19: #{wave_transform.1} parent=1 // pred_check_branch
      %35 = sbr.rel (0) target = $region21
    $region20: #{wave_transform.1} parent=1 // pred_region
      _
    $region21: #{wave_transform.1} parent=1 // pred_fallthru
      _
    // Predicated region
    $region22: #{wave_transform.1} parent=1 // pred_check
      _
    $region23: #{wave_transform.1} parent=1 // pred_check_branch
      %37 = sbr.rel (0) target = $region25
    $region24: #{wave_transform.1} parent=1 // pred_region
      _
    $region25: #{wave_transform.1} parent=1 // pred_fallthru
      _
    // Predicated region
    $region26: #{wave_transform.1} parent=1 // pred_check
      _
    $region27: #{wave_transform.1} parent=1 // pred_check_branch
      %39 = sbr.rel (0) target = $region29
    $region28: #{wave_transform.1} parent=1 // pred_region
      _
    $region29: #{wave_transform.1} parent=1 // pred_fallthru
      _
    // Predicated region
    $region30: #{wave_transform.1} parent=1 // pred_check
      _
    $region31: #{wave_transform.1} parent=1 // pred_check_branch
      %41 = sbr.rel (0) target = $region33
    $region32: #{wave_transform.1} parent=1 // pred_region
      _
    $region33: #{wave_transform.1} parent=1 // pred_fallthru
      _
    // Predicated region
    $region34: #{wave_transform.1} parent=1 // pred_check
      _
    $region35: #{wave_transform.1} parent=1 // pred_check_branch
      %43 = sbr.rel (0) target = $region37
    $region36: #{wave_transform.1} parent=1 // pred_region
      _
    $region37: #{wave_transform.1} parent=1 // pred_fallthru
      _
    // Predicated region
    $region38: #{wave_transform.1} parent=1 // pred_check
      _
    $region39: #{wave_transform.1} parent=1 // pred_check_branch
      %45 = sbr.rel (0) target = $region41
    $region40: #{wave_transform.1} parent=1 // pred_region
      %47 = vsyncadd [#allocation3], 0
      %s48 = sshll.u32 %s9, 4
      %s49 = int_to_ptr.hbm [resolvable:$true] %s48
      %s50 = sshll.u32 [#allocation2], 4
      %s51 = int_to_ptr.vmem [resolvable:$true] %s50
      %56 = dma.hbm_to_vmem [thread:$0]  %s49, 16384, %s51, [#allocation3], 512, 512, 32
    $region41: #{wave_transform.1} parent=1 // pred_fallthru
      _
    // Predicated region
    $region42: #{wave_transform.1} parent=1 // pred_check
      _
    $region43: #{wave_transform.1} parent=1 // pred_check_branch
      %58 = sbr.rel (0) target = $region45
    $region44: #{wave_transform.1} parent=1 // pred_region
      %60 = vsyncadd [#allocation5], 0
      %s61 = sshll.u32 %s10, 4
      %s62 = int_to_ptr.hbm [resolvable:$true] %s61
      %s63 = sshll.u32 [#allocation4], 4
      %s64 = int_to_ptr.vmem [resolvable:$true] %s63
      %69 = dma.hbm_to_vmem [thread:$0]  %s62, 8192, %s64, [#allocation5], 512, 512, 32
    $region45: #{wave_transform.1} parent=1 // pred_fallthru
      _
    // Predicated region
    $region46: #{wave_transform.1} parent=1 // pred_check
      _
    $region47: #{wave_transform.1} parent=1 // pred_check_branch
      %71 = sbr.rel (0) target = $region49
    $region48: #{wave_transform.1} parent=1 // pred_region
      %73 = vsyncadd [#allocation5], 0
      %s74 = sshll.u32 %s11, 4
      %s75 = int_to_ptr.hbm [resolvable:$true] %s74
      %s76 = sshll.u32 [#allocation6], 4
      %s77 = int_to_ptr.vmem [resolvable:$true] %s76
      %82 = dma.hbm_to_vmem [thread:$0]  %s75, 8192, %s77, [#allocation5], 512, 512, 32
    $region49: #{wave_transform.1} parent=1 // pred_fallthru
      _
    // Predicated region
    $region50: #{wave_transform.1} parent=1 // pred_check
      _
    $region51: #{wave_transform.1} parent=1 // pred_check_branch
      %84 = sbr.rel (0) target = $region53
    $region52: #{wave_transform.1} parent=1 // pred_region
      %86 = vsyncadd [#allocation8], 0
      %s87 = sshll.u32 %s12, 4
      %s88 = int_to_ptr.hbm [resolvable:$true] %s87
      %s89 = sshll.u32 [#allocation7], 4
      %s90 = int_to_ptr.vmem [resolvable:$true] %s89
      %95 = dma.hbm_to_vmem [thread:$0]  %s88, 8192, %s90, [#allocation8], 512, 512, 32
    $region53: #{wave_transform.1} parent=1 // pred_fallthru
      _
    // Predicated region
    $region54: #{wave_transform.1} parent=1 // pred_check
      _
    $region55: #{wave_transform.1} parent=1 // pred_check_branch
      %97 = sbr.rel (0) target = $region57
    $region56: #{wave_transform.1} parent=1 // pred_region
      %99 = vsyncadd [#allocation8], 0
      %s100 = sshll.u32 %s13, 4
      %s101 = int_to_ptr.hbm [resolvable:$true] %s100
      %s102 = sshll.u32 [#allocation9], 4
      %s103 = int_to_ptr.vmem [resolvable:$true] %s102
      %108 = dma.hbm_to_vmem [thread:$0]  %s101, 20480, %s103, [#allocation8], 256, 256, 16
    $region57: #{wave_transform.1} parent=1 // pred_fallthru
      _
    // Predicated region
    $region58: #{wave_transform.1} parent=1 // pred_check
      _
    $region59: #{wave_transform.1} parent=1 // pred_check_branch
      %110 = sbr.rel (0) target = $region61
    $region60: #{wave_transform.1} parent=1 // pred_region
      _
    $region61: #{wave_transform.1} parent=1 // pred_fallthru
      _
    // Predicated region
    $region62: #{wave_transform.1} parent=1 // pred_check
      _
    $region63: #{wave_transform.1} parent=1 // pred_check_branch
      %112 = sbr.rel (0) target = $region65
    $region64: #{wave_transform.1} parent=1 // pred_region
      %114 = vsyncadd [#allocation11], 0
      %s115 = sshll.u32 %s15, 4
      %s116 = int_to_ptr.hbm [resolvable:$true] %s115
      %s117 = sshll.u32 [#allocation10], 4
      %s118 = int_to_ptr.vmem [resolvable:$true] %s117
      %123 = dma.hbm_to_vmem [thread:$0]  %s116, 8192, %s118, [#allocation11], 128, 128, 8
    $region65: #{wave_transform.1} parent=1 // pred_fallthru
      _
    // Predicated region
    $region66: #{wave_transform.1} parent=1 // pred_check
      _
    $region67: #{wave_transform.1} parent=1 // pred_check_branch
      %125 = sbr.rel (0) target = $region69
    $region68: #{wave_transform.1} parent=1 // pred_region
      %127 = vsyncadd [#allocation11], 0
      %s128 = sshll.u32 %s16, 4
      %s129 = int_to_ptr.hbm [resolvable:$true] %s128
      %s130 = sshll.u32 [#allocation12], 4
      %s131 = int_to_ptr.vmem [resolvable:$true] %s130
      %136 = dma.hbm_to_vmem [thread:$0]  %s129, 8192, %s131, [#allocation11], 128, 128, 8
    $region69: #{wave_transform.1} parent=1 // pred_fallthru
      _
    // Predicated region
    $region70: #{wave_transform.1} parent=1 // pred_check
      _
    $region71: #{wave_transform.1} parent=1 // pred_check_branch
      %138 = sbr.rel (0) target = $region73
    $region72: #{wave_transform.1} parent=1 // pred_region
      %140 = dma.done [#allocation3], 16384
    $region73: #{wave_transform.1} parent=1 // pred_fallthru
      _
    // Predicated region
    $region74: #{wave_transform.1} parent=1 // pred_check
      _
    $region75: #{wave_transform.1} parent=1 // pred_check_branch
      %142 = sbr.rel (0) target = $region77
    $region76: #{wave_transform.1} parent=1 // pred_region
      %144 = dma.done [#allocation5], 8192
    $region77: #{wave_transform.1} parent=1 // pred_fallthru
      _
    // Predicated region
    $region78: #{wave_transform.1} parent=1 // pred_check
      _
    $region79: #{wave_transform.1} parent=1 // pred_check_branch
      %146 = sbr.rel (0) target = $region81
    $region80: #{wave_transform.1} parent=1 // pred_region
      %148 = dma.done [#allocation5], 8192
    $region81: #{wave_transform.1} parent=1 // pred_fallthru
      _
    // Predicated region
    $region82: #{wave_transform.1} parent=1 // pred_check
      _
    $region83: #{wave_transform.1} parent=1 // pred_check_branch
      %150 = sbr.rel (0) target = $region85
    $region84: #{wave_transform.1} parent=1 // pred_region
      %152 = dma.done [#allocation8], 8192
    $region85: #{wave_transform.1} parent=1 // pred_fallthru
      _
    // Predicated region
    $region86: #{wave_transform.1} parent=1 // pred_check
      _
    $region87: #{wave_transform.1} parent=1 // pred_check_branch
      %154 = sbr.rel (0) target = $region89
    $region88: #{wave_transform.1} parent=1 // pred_region
      %156 = dma.done [#allocation8], 20480
    $region89: #{wave_transform.1} parent=1 // pred_fallthru
      _
    // Predicated region
    $region90: #{wave_transform.1} parent=1 // pred_check
      _
    $region91: #{wave_transform.1} parent=1 // pred_check_branch
      %158 = sbr.rel (0) target = $region93
    $region92: #{wave_transform.1} parent=1 // pred_region
      %160 = dma.done [#allocation11], 8192
    $region93: #{wave_transform.1} parent=1 // pred_fallthru
      _
    // Predicated region
    $region94: #{wave_transform.1} parent=1 // pred_check
      _
    $region95: #{wave_transform.1} parent=1 // pred_check_branch
      %162 = sbr.rel (0) target = $region97
    $region96: #{wave_transform.1} parent=1 // pred_region
      %164 = dma.done [#allocation11], 8192
    $region97: #{wave_transform.1} parent=1 // pred_fallthru
      _
    %v165 = vld [vmem:[%s0] sm:$0xff]
    %v166 = vld [vmem:[%s0 + $0x8] sm:$0xff]
    %v167 = vld [vmem:[%s0 + $0x10] sm:$0xff]
    %v168 = vld [vmem:[%s0 + $0x18] sm:$0xff]
    %v169 = vld [vmem:[%s0 + $0x20] sm:$0xff]
    %v170 = vld [vmem:[%s0 + $0x28] sm:$0xff]
    %v171 = vld [vmem:[%s1] sm:$0xff]
    %v172 = vld [vmem:[%s2] sm:$0xff]
    %174 = vset.pattern.permute.xlu0 0
    %175 = vperm.xlu0 %174, %v172
    %v176 = vpop.permute.xlu0 %175
    %vm178 = vcmask 195584
    %v180 = vsel %vm178, %v171, 0
    %182 = vmatpush.msra.mxu0 0.0
    %183 = vmatpush.msra.mxu0 0.0
    %184 = vmatpush.msra.mxu0 0.0
    %185 = vmatpush.msra.mxu0 0.0
    %186 = vmatpush.msra.mxu0 0.0
    %187 = vmatpush.msra.mxu0 0.0
    %188 = vmatpush.msra.mxu0 0.0
    %189 = vmatpush.msra.mxu0 0.0
    %190 = vmatpush.msra.mxu0 0.0
    %191 = vmatpush.msra.mxu0 0.0
    %192 = vmatpush.msra.mxu0 0.0
    %193 = vmatpush.msra.mxu0 0.0
    %194 = vmatpush.msra.mxu0 0.0
    %195 = vmatpush.msra.mxu0 %v169
    %196 = vmatpush.msra.mxu0 %v167
    %197 = vmatpush.msra.mxu0 %v165
    %198 = vmatmul.f32.gmra.mxu0 %v180
    %v199 = vpop.f32.mrf.mxu0
    %v200 = vadd.f32 %v176, %v199
    %201 = vdwg.mxu0
    %202 = vmatpush.msra.mxu0 0.0
    %203 = vmatpush.msra.mxu0 0.0
    %204 = vmatpush.msra.mxu0 0.0
    %205 = vmatpush.msra.mxu0 0.0
    %206 = vmatpush.msra.mxu0 0.0
    %207 = vmatpush.msra.mxu0 0.0
    %208 = vmatpush.msra.mxu0 0.0
    %209 = vmatpush.msra.mxu0 0.0
    %210 = vmatpush.msra.mxu0 0.0
    %211 = vmatpush.msra.mxu0 0.0
    %212 = vmatpush.msra.mxu0 0.0
    %213 = vmatpush.msra.mxu0 0.0
    %214 = vmatpush.msra.mxu0 0.0
    %215 = vmatpush.msra.mxu0 %v170
    %216 = vmatpush.msra.mxu0 %v168
    %217 = vmatpush.msra.mxu0 %v166
    %218 = vmatmul.f32.gmra.mxu0 %v180
    %v219 = vpop.f32.mrf.mxu0
    %v220 = vadd.f32 %v176, %v219
    %221 = vdwg.mxu0
    %v222 = vmul.f32 %v200, 0.2
    %v223 = vmul.f32 %v220, 0.2
    %v224 = vmax.f32 %v200, %v222
    %v225 = vmax.f32 %v220, %v223
    %v226 = vld [vmem:[#allocation2] sm:$0xff]
    %v227 = vld [vmem:[#allocation2 + $0x8] sm:$0xff]
    %v228 = vld [vmem:[#allocation2 + $0x10] sm:$0xff]
    %v229 = vld [vmem:[#allocation2 + $0x18] sm:$0xff]
    %v230 = vld [vmem:[#allocation2 + $0x20] sm:$0xff]
    %v231 = vld [vmem:[#allocation2 + $0x28] sm:$0xff]
    %v232 = vld [vmem:[#allocation2 + $0x30] sm:$0xff]
    %v233 = vld [vmem:[#allocation2 + $0x38] sm:$0xff]
    %v234 = vld [vmem:[#allocation2 + $0x40] sm:$0xff]
    %v235 = vld [vmem:[#allocation2 + $0x48] sm:$0xff]
    %v236 = vld [vmem:[#allocation2 + $0x50] sm:$0xff]
    %v237 = vld [vmem:[#allocation2 + $0x58] sm:$0xff]
    %v238 = vld [vmem:[#allocation2 + $0x60] sm:$0xff]
    %v239 = vld [vmem:[#allocation2 + $0x68] sm:$0xff]
    %v240 = vld [vmem:[#allocation2 + $0x70] sm:$0xff]
    %v241 = vld [vmem:[#allocation2 + $0x78] sm:$0xff]
    %v242 = vld [vmem:[#allocation2 + $0x80] sm:$0xff]
    %v243 = vld [vmem:[#allocation2 + $0x88] sm:$0xff]
    %v244 = vld [vmem:[#allocation2 + $0x90] sm:$0xff]
    %v245 = vld [vmem:[#allocation2 + $0x98] sm:$0xff]
    %v246 = vld [vmem:[#allocation2 + $0xa0] sm:$0xff]
    %v247 = vld [vmem:[#allocation2 + $0xa8] sm:$0xff]
    %v248 = vld [vmem:[#allocation2 + $0xb0] sm:$0xff]
    %v249 = vld [vmem:[#allocation2 + $0xb8] sm:$0xff]
    %v250 = vld [vmem:[#allocation2 + $0xc0] sm:$0xff]
    %v251 = vld [vmem:[#allocation2 + $0xc8] sm:$0xff]
    %v252 = vld [vmem:[#allocation2 + $0xd0] sm:$0xff]
    %v253 = vld [vmem:[#allocation2 + $0xd8] sm:$0xff]
    %v254 = vld [vmem:[#allocation2 + $0xe0] sm:$0xff]
    %v255 = vld [vmem:[#allocation2 + $0xe8] sm:$0xff]
    %v256 = vld [vmem:[#allocation2 + $0xf0] sm:$0xff]
    %v257 = vld [vmem:[#allocation2 + $0xf8] sm:$0xff]
    %v258 = vld [vmem:[#allocation2 + $0x100] sm:$0xff]
    %v259 = vld [vmem:[#allocation2 + $0x108] sm:$0xff]
    %v260 = vld [vmem:[#allocation2 + $0x110] sm:$0xff]
    %v261 = vld [vmem:[#allocation2 + $0x118] sm:$0xff]
    %v262 = vld [vmem:[#allocation2 + $0x120] sm:$0xff]
    %v263 = vld [vmem:[#allocation2 + $0x128] sm:$0xff]
    %v264 = vld [vmem:[#allocation2 + $0x130] sm:$0xff]
    %v265 = vld [vmem:[#allocation2 + $0x138] sm:$0xff]
    %v266 = vld [vmem:[#allocation2 + $0x140] sm:$0xff]
    %v267 = vld [vmem:[#allocation2 + $0x148] sm:$0xff]
    %v268 = vld [vmem:[#allocation2 + $0x150] sm:$0xff]
    %v269 = vld [vmem:[#allocation2 + $0x158] sm:$0xff]
    %v270 = vld [vmem:[#allocation2 + $0x160] sm:$0xff]
    %v271 = vld [vmem:[#allocation2 + $0x168] sm:$0xff]
    %v272 = vld [vmem:[#allocation2 + $0x170] sm:$0xff]
    %v273 = vld [vmem:[#allocation2 + $0x178] sm:$0xff]
    %v274 = vld [vmem:[#allocation2 + $0x180] sm:$0xff]
    %v275 = vld [vmem:[#allocation2 + $0x188] sm:$0xff]
    %v276 = vld [vmem:[#allocation2 + $0x190] sm:$0xff]
    %v277 = vld [vmem:[#allocation2 + $0x198] sm:$0xff]
    %v278 = vld [vmem:[#allocation2 + $0x1a0] sm:$0xff]
    %v279 = vld [vmem:[#allocation2 + $0x1a8] sm:$0xff]
    %v280 = vld [vmem:[#allocation2 + $0x1b0] sm:$0xff]
    %v281 = vld [vmem:[#allocation2 + $0x1b8] sm:$0xff]
    %v282 = vld [vmem:[#allocation2 + $0x1c0] sm:$0xff]
    %v283 = vld [vmem:[#allocation2 + $0x1c8] sm:$0xff]
    %v284 = vld [vmem:[#allocation2 + $0x1d0] sm:$0xff]
    %v285 = vld [vmem:[#allocation2 + $0x1d8] sm:$0xff]
    %v286 = vld [vmem:[#allocation2 + $0x1e0] sm:$0xff]
    %v287 = vld [vmem:[#allocation2 + $0x1e8] sm:$0xff]
    %v288 = vld [vmem:[#allocation2 + $0x1f0] sm:$0xff]
    %v289 = vld [vmem:[#allocation2 + $0x1f8] sm:$0xff]
    %v290 = vld [vmem:[#allocation2 + $0x200] sm:$0xff]
    %v291 = vld [vmem:[#allocation2 + $0x208] sm:$0xff]
    %v292 = vld [vmem:[#allocation2 + $0x210] sm:$0xff]
    %v293 = vld [vmem:[#allocation2 + $0x218] sm:$0xff]
    %v294 = vld [vmem:[#allocation2 + $0x220] sm:$0xff]
    %v295 = vld [vmem:[#allocation2 + $0x228] sm:$0xff]
    %v296 = vld [vmem:[#allocation2 + $0x230] sm:$0xff]
    %v297 = vld [vmem:[#allocation2 + $0x238] sm:$0xff]
    %v298 = vld [vmem:[#allocation2 + $0x240] sm:$0xff]
    %v299 = vld [vmem:[#allocation2 + $0x248] sm:$0xff]
    %v300 = vld [vmem:[#allocation2 + $0x250] sm:$0xff]
    %v301 = vld [vmem:[#allocation2 + $0x258] sm:$0xff]
    %v302 = vld [vmem:[#allocation2 + $0x260] sm:$0xff]
    %v303 = vld [vmem:[#allocation2 + $0x268] sm:$0xff]
    %v304 = vld [vmem:[#allocation2 + $0x270] sm:$0xff]
    %v305 = vld [vmem:[#allocation2 + $0x278] sm:$0xff]
    %v306 = vld [vmem:[#allocation2 + $0x280] sm:$0xff]
    %v307 = vld [vmem:[#allocation2 + $0x288] sm:$0xff]
    %v308 = vld [vmem:[#allocation2 + $0x290] sm:$0xff]
    %v309 = vld [vmem:[#allocation2 + $0x298] sm:$0xff]
    %v310 = vld [vmem:[#allocation2 + $0x2a0] sm:$0xff]
    %v311 = vld [vmem:[#allocation2 + $0x2a8] sm:$0xff]
    %v312 = vld [vmem:[#allocation2 + $0x2b0] sm:$0xff]
    %v313 = vld [vmem:[#allocation2 + $0x2b8] sm:$0xff]
    %v314 = vld [vmem:[#allocation2 + $0x2c0] sm:$0xff]
    %v315 = vld [vmem:[#allocation2 + $0x2c8] sm:$0xff]
    %v316 = vld [vmem:[#allocation2 + $0x2d0] sm:$0xff]
    %v317 = vld [vmem:[#allocation2 + $0x2d8] sm:$0xff]
    %v318 = vld [vmem:[#allocation2 + $0x2e0] sm:$0xff]
    %v319 = vld [vmem:[#allocation2 + $0x2e8] sm:$0xff]
    %v320 = vld [vmem:[#allocation2 + $0x2f0] sm:$0xff]
    %v321 = vld [vmem:[#allocation2 + $0x2f8] sm:$0xff]
    %v322 = vld [vmem:[#allocation2 + $0x300] sm:$0xff]
    %v323 = vld [vmem:[#allocation2 + $0x308] sm:$0xff]
    %v324 = vld [vmem:[#allocation2 + $0x310] sm:$0xff]
    %v325 = vld [vmem:[#allocation2 + $0x318] sm:$0xff]
    %v326 = vld [vmem:[#allocation2 + $0x320] sm:$0xff]
    %v327 = vld [vmem:[#allocation2 + $0x328] sm:$0xff]
    %v328 = vld [vmem:[#allocation2 + $0x330] sm:$0xff]
    %v329 = vld [vmem:[#allocation2 + $0x338] sm:$0xff]
    %v330 = vld [vmem:[#allocation2 + $0x340] sm:$0xff]
    %v331 = vld [vmem:[#allocation2 + $0x348] sm:$0xff]
    %v332 = vld [vmem:[#allocation2 + $0x350] sm:$0xff]
    %v333 = vld [vmem:[#allocation2 + $0x358] sm:$0xff]
    %v334 = vld [vmem:[#allocation2 + $0x360] sm:$0xff]
    %v335 = vld [vmem:[#allocation2 + $0x368] sm:$0xff]
    %v336 = vld [vmem:[#allocation2 + $0x370] sm:$0xff]
    %v337 = vld [vmem:[#allocation2 + $0x378] sm:$0xff]
    %v338 = vld [vmem:[#allocation2 + $0x380] sm:$0xff]
    %v339 = vld [vmem:[#allocation2 + $0x388] sm:$0xff]
    %v340 = vld [vmem:[#allocation2 + $0x390] sm:$0xff]
    %v341 = vld [vmem:[#allocation2 + $0x398] sm:$0xff]
    %v342 = vld [vmem:[#allocation2 + $0x3a0] sm:$0xff]
    %v343 = vld [vmem:[#allocation2 + $0x3a8] sm:$0xff]
    %v344 = vld [vmem:[#allocation2 + $0x3b0] sm:$0xff]
    %v345 = vld [vmem:[#allocation2 + $0x3b8] sm:$0xff]
    %v346 = vld [vmem:[#allocation2 + $0x3c0] sm:$0xff]
    %v347 = vld [vmem:[#allocation2 + $0x3c8] sm:$0xff]
    %v348 = vld [vmem:[#allocation2 + $0x3d0] sm:$0xff]
    %v349 = vld [vmem:[#allocation2 + $0x3d8] sm:$0xff]
    %v350 = vld [vmem:[#allocation2 + $0x3e0] sm:$0xff]
    %v351 = vld [vmem:[#allocation2 + $0x3e8] sm:$0xff]
    %v352 = vld [vmem:[#allocation2 + $0x3f0] sm:$0xff]
    %v353 = vld [vmem:[#allocation2 + $0x3f8] sm:$0xff]
    %354 = vmatpush.msra.mxu0 %v286
    %355 = vmatpush.msra.mxu0 %v282
    %356 = vmatpush.msra.mxu0 %v278
    %357 = vmatpush.msra.mxu0 %v274
    %358 = vmatpush.msra.mxu0 %v270
    %359 = vmatpush.msra.mxu0 %v266
    %360 = vmatpush.msra.mxu0 %v262
    %361 = vmatpush.msra.mxu0 %v258
    %362 = vmatpush.msra.mxu0 %v254
    %363 = vmatpush.msra.mxu0 %v250
    %364 = vmatpush.msra.mxu0 %v246
    %365 = vmatpush.msra.mxu0 %v242
    %366 = vmatpush.msra.mxu0 %v238
    %367 = vmatpush.msra.mxu0 %v234
    %368 = vmatpush.msra.mxu0 %v230
    %369 = vmatpush.msra.mxu0 %v226
    %370 = vmatmul.f32.gmra.mxu0 %v224
    %v371 = vpop.f32.mrf.mxu0
    %v372 = vadd.f32 0.0, %v371
    %373 = vdwg.mxu0
    %374 = vmatpush.msra.mxu0 %v350
    %375 = vmatpush.msra.mxu0 %v346
    %376 = vmatpush.msra.mxu0 %v342
    %377 = vmatpush.msra.mxu0 %v338
    %378 = vmatpush.msra.mxu0 %v334
    %379 = vmatpush.msra.mxu0 %v330
    %380 = vmatpush.msra.mxu0 %v326
    %381 = vmatpush.msra.mxu0 %v322
    %382 = vmatpush.msra.mxu0 %v318
    %383 = vmatpush.msra.mxu0 %v314
    %384 = vmatpush.msra.mxu0 %v310
    %385 = vmatpush.msra.mxu0 %v306
    %386 = vmatpush.msra.mxu0 %v302
    %387 = vmatpush.msra.mxu0 %v298
    %388 = vmatpush.msra.mxu0 %v294
    %389 = vmatpush.msra.mxu0 %v290
    %390 = vmatmul.f32.gmra.mxu0 %v225
    %v391 = vpop.f32.mrf.mxu0
    %v392 = vadd.f32 %v372, %v391
    %393 = vdwg.mxu0
    %394 = vmatpush.msra.mxu0 %v287
    %395 = vmatpush.msra.mxu0 %v283
    %396 = vmatpush.msra.mxu0 %v279
    %397 = vmatpush.msra.mxu0 %v275
    %398 = vmatpush.msra.mxu0 %v271
    %399 = vmatpush.msra.mxu0 %v267
    %400 = vmatpush.msra.mxu0 %v263
    %401 = vmatpush.msra.mxu0 %v259
    %402 = vmatpush.msra.mxu0 %v255
    %403 = vmatpush.msra.mxu0 %v251
    %404 = vmatpush.msra.mxu0 %v247
    %405 = vmatpush.msra.mxu0 %v243
    %406 = vmatpush.msra.mxu0 %v239
    %407 = vmatpush.msra.mxu0 %v235
    %408 = vmatpush.msra.mxu0 %v231
    %409 = vmatpush.msra.mxu0 %v227
    %410 = vmatmul.f32.gmra.mxu0 %v224
    %v411 = vpop.f32.mrf.mxu0
    %v412 = vadd.f32 0.0, %v411
    %413 = vdwg.mxu0
    %414 = vmatpush.msra.mxu0 %v351
    %415 = vmatpush.msra.mxu0 %v347
    %416 = vmatpush.msra.mxu0 %v343
    %417 = vmatpush.msra.mxu0 %v339
    %418 = vmatpush.msra.mxu0 %v335
    %419 = vmatpush.msra.mxu0 %v331
    %420 = vmatpush.msra.mxu0 %v327
    %421 = vmatpush.msra.mxu0 %v323
    %422 = vmatpush.msra.mxu0 %v319
    %423 = vmatpush.msra.mxu0 %v315
    %424 = vmatpush.msra.mxu0 %v311
    %425 = vmatpush.msra.mxu0 %v307
    %426 = vmatpush.msra.mxu0 %v303
    %427 = vmatpush.msra.mxu0 %v299
    %428 = vmatpush.msra.mxu0 %v295
    %429 = vmatpush.msra.mxu0 %v291
    %430 = vmatmul.f32.gmra.mxu0 %v225
    %v431 = vpop.f32.mrf.mxu0
    %v432 = vadd.f32 %v412, %v431
    %433 = vdwg.mxu0
    %434 = vmatpush.msra.mxu0 %v288
    %435 = vmatpush.msra.mxu0 %v284
    %436 = vmatpush.msra.mxu0 %v280
    %437 = vmatpush.msra.mxu0 %v276
    %438 = vmatpush.msra.mxu0 %v272
    %439 = vmatpush.msra.mxu0 %v268
    %440 = vmatpush.msra.mxu0 %v264
    %441 = vmatpush.msra.mxu0 %v260
    %442 = vmatpush.msra.mxu0 %v256
    %443 = vmatpush.msra.mxu0 %v252
    %444 = vmatpush.msra.mxu0 %v248
    %445 = vmatpush.msra.mxu0 %v244
    %446 = vmatpush.msra.mxu0 %v240
    %447 = vmatpush.msra.mxu0 %v236
    %448 = vmatpush.msra.mxu0 %v232
    %449 = vmatpush.msra.mxu0 %v228
    %450 = vmatmul.f32.gmra.mxu0 %v224
    %v451 = vpop.f32.mrf.mxu0
    %v452 = vadd.f32 0.0, %v451
    %453 = vdwg.mxu0
    %454 = vmatpush.msra.mxu0 %v352
    %455 = vmatpush.msra.mxu0 %v348
    %456 = vmatpush.msra.mxu0 %v344
    %457 = vmatpush.msra.mxu0 %v340
    %458 = vmatpush.msra.mxu0 %v336
    %459 = vmatpush.msra.mxu0 %v332
    %460 = vmatpush.msra.mxu0 %v328
    %461 = vmatpush.msra.mxu0 %v324
    %462 = vmatpush.msra.mxu0 %v320
    %463 = vmatpush.msra.mxu0 %v316
    %464 = vmatpush.msra.mxu0 %v312
    %465 = vmatpush.msra.mxu0 %v308
    %466 = vmatpush.msra.mxu0 %v304
    %467 = vmatpush.msra.mxu0 %v300
    %468 = vmatpush.msra.mxu0 %v296
    %469 = vmatpush.msra.mxu0 %v292
    %470 = vmatmul.f32.gmra.mxu0 %v225
    %v471 = vpop.f32.mrf.mxu0
    %v472 = vadd.f32 %v452, %v471
    %473 = vdwg.mxu0
    %474 = vmatpush.msra.mxu0 %v289
    %475 = vmatpush.msra.mxu0 %v285
    %476 = vmatpush.msra.mxu0 %v281
    %477 = vmatpush.msra.mxu0 %v277
    %478 = vmatpush.msra.mxu0 %v273
    %479 = vmatpush.msra.mxu0 %v269
    %480 = vmatpush.msra.mxu0 %v265
    %481 = vmatpush.msra.mxu0 %v261
    %482 = vmatpush.msra.mxu0 %v257
    %483 = vmatpush.msra.mxu0 %v253
    %484 = vmatpush.msra.mxu0 %v249
    %485 = vmatpush.msra.mxu0 %v245
    %486 = vmatpush.msra.mxu0 %v241
    %487 = vmatpush.msra.mxu0 %v237
    %488 = vmatpush.msra.mxu0 %v233
    %489 = vmatpush.msra.mxu0 %v229
    %490 = vmatmul.f32.gmra.mxu0 %v224
    %v491 = vpop.f32.mrf.mxu0
    %v492 = vadd.f32 0.0, %v491
    %493 = vdwg.mxu0
    %494 = vmatpush.msra.mxu0 %v353
    %495 = vmatpush.msra.mxu0 %v349
    %496 = vmatpush.msra.mxu0 %v345
    %497 = vmatpush.msra.mxu0 %v341
    %498 = vmatpush.msra.mxu0 %v337
    %499 = vmatpush.msra.mxu0 %v333
    %500 = vmatpush.msra.mxu0 %v329
    %501 = vmatpush.msra.mxu0 %v325
    %502 = vmatpush.msra.mxu0 %v321
    %503 = vmatpush.msra.mxu0 %v317
    %504 = vmatpush.msra.mxu0 %v313
    %505 = vmatpush.msra.mxu0 %v309
    %506 = vmatpush.msra.mxu0 %v305
    %507 = vmatpush.msra.mxu0 %v301
    %508 = vmatpush.msra.mxu0 %v297
    %509 = vmatpush.msra.mxu0 %v293
    %510 = vmatmul.f32.gmra.mxu0 %v225
    %v511 = vpop.f32.mrf.mxu0
    %v512 = vadd.f32 %v492, %v511
    %513 = vdwg.mxu0
    %v514 = vld [vmem:[#allocation4] sm:$0xff]
    %v515 = vld [vmem:[#allocation4 + $0x8] sm:$0xff]
    %v516 = vld [vmem:[#allocation4 + $0x10] sm:$0xff]
    %v517 = vld [vmem:[#allocation4 + $0x18] sm:$0xff]
    %v518 = vld [vmem:[#allocation4 + $0x20] sm:$0xff]
    %v519 = vld [vmem:[#allocation4 + $0x28] sm:$0xff]
    %v520 = vld [vmem:[#allocation4 + $0x30] sm:$0xff]
    %v521 = vld [vmem:[#allocation4 + $0x38] sm:$0xff]
    %v522 = vld [vmem:[#allocation4 + $0x40] sm:$0xff]
    %v523 = vld [vmem:[#allocation4 + $0x48] sm:$0xff]
    %v524 = vld [vmem:[#allocation4 + $0x50] sm:$0xff]
    %v525 = vld [vmem:[#allocation4 + $0x58] sm:$0xff]
    %v526 = vld [vmem:[#allocation4 + $0x60] sm:$0xff]
    %v527 = vld [vmem:[#allocation4 + $0x68] sm:$0xff]
    %v528 = vld [vmem:[#allocation4 + $0x70] sm:$0xff]
    %v529 = vld [vmem:[#allocation4 + $0x78] sm:$0xff]
    %v530 = vld [vmem:[#allocation4 + $0x80] sm:$0xff]
    %v531 = vld [vmem:[#allocation4 + $0x88] sm:$0xff]
    %v532 = vld [vmem:[#allocation4 + $0x90] sm:$0xff]
    %v533 = vld [vmem:[#allocation4 + $0x98] sm:$0xff]
    %v534 = vld [vmem:[#allocation4 + $0xa0] sm:$0xff]
    %v535 = vld [vmem:[#allocation4 + $0xa8] sm:$0xff]
    %v536 = vld [vmem:[#allocation4 + $0xb0] sm:$0xff]
    %v537 = vld [vmem:[#allocation4 + $0xb8] sm:$0xff]
    %v538 = vld [vmem:[#allocation4 + $0xc0] sm:$0xff]
    %v539 = vld [vmem:[#allocation4 + $0xc8] sm:$0xff]
    %v540 = vld [vmem:[#allocation4 + $0xd0] sm:$0xff]
    %v541 = vld [vmem:[#allocation4 + $0xd8] sm:$0xff]
    %v542 = vld [vmem:[#allocation4 + $0xe0] sm:$0xff]
    %v543 = vld [vmem:[#allocation4 + $0xe8] sm:$0xff]
    %v544 = vld [vmem:[#allocation4 + $0xf0] sm:$0xff]
    %v545 = vld [vmem:[#allocation4 + $0xf8] sm:$0xff]
    %v546 = vld [vmem:[#allocation4 + $0x100] sm:$0xff]
    %v547 = vld [vmem:[#allocation4 + $0x108] sm:$0xff]
    %v548 = vld [vmem:[#allocation4 + $0x110] sm:$0xff]
    %v549 = vld [vmem:[#allocation4 + $0x118] sm:$0xff]
    %v550 = vld [vmem:[#allocation4 + $0x120] sm:$0xff]
    %v551 = vld [vmem:[#allocation4 + $0x128] sm:$0xff]
    %v552 = vld [vmem:[#allocation4 + $0x130] sm:$0xff]
    %v553 = vld [vmem:[#allocation4 + $0x138] sm:$0xff]
    %v554 = vld [vmem:[#allocation4 + $0x140] sm:$0xff]
    %v555 = vld [vmem:[#allocation4 + $0x148] sm:$0xff]
    %v556 = vld [vmem:[#allocation4 + $0x150] sm:$0xff]
    %v557 = vld [vmem:[#allocation4 + $0x158] sm:$0xff]
    %v558 = vld [vmem:[#allocation4 + $0x160] sm:$0xff]
    %v559 = vld [vmem:[#allocation4 + $0x168] sm:$0xff]
    %v560 = vld [vmem:[#allocation4 + $0x170] sm:$0xff]
    %v561 = vld [vmem:[#allocation4 + $0x178] sm:$0xff]
    %v562 = vld [vmem:[#allocation4 + $0x180] sm:$0xff]
    %v563 = vld [vmem:[#allocation4 + $0x188] sm:$0xff]
    %v564 = vld [vmem:[#allocation4 + $0x190] sm:$0xff]
    %v565 = vld [vmem:[#allocation4 + $0x198] sm:$0xff]
    %v566 = vld [vmem:[#allocation4 + $0x1a0] sm:$0xff]
    %v567 = vld [vmem:[#allocation4 + $0x1a8] sm:$0xff]
    %v568 = vld [vmem:[#allocation4 + $0x1b0] sm:$0xff]
    %v569 = vld [vmem:[#allocation4 + $0x1b8] sm:$0xff]
    %v570 = vld [vmem:[#allocation4 + $0x1c0] sm:$0xff]
    %v571 = vld [vmem:[#allocation4 + $0x1c8] sm:$0xff]
    %v572 = vld [vmem:[#allocation4 + $0x1d0] sm:$0xff]
    %v573 = vld [vmem:[#allocation4 + $0x1d8] sm:$0xff]
    %v574 = vld [vmem:[#allocation4 + $0x1e0] sm:$0xff]
    %v575 = vld [vmem:[#allocation4 + $0x1e8] sm:$0xff]
    %v576 = vld [vmem:[#allocation4 + $0x1f0] sm:$0xff]
    %v577 = vld [vmem:[#allocation4 + $0x1f8] sm:$0xff]
    %578 = vmatpush.msra.mxu0 %v574
    %579 = vmatpush.msra.mxu0 %v570
    %580 = vmatpush.msra.mxu0 %v566
    %581 = vmatpush.msra.mxu0 %v562
    %582 = vmatpush.msra.mxu0 %v558
    %583 = vmatpush.msra.mxu0 %v554
    %584 = vmatpush.msra.mxu0 %v550
    %585 = vmatpush.msra.mxu0 %v546
    %586 = vmatpush.msra.mxu0 %v542
    %587 = vmatpush.msra.mxu0 %v538
    %588 = vmatpush.msra.mxu0 %v534
    %589 = vmatpush.msra.mxu0 %v530
    %590 = vmatpush.msra.mxu0 %v526
    %591 = vmatpush.msra.mxu0 %v522
    %592 = vmatpush.msra.mxu0 %v518
    %593 = vmatpush.msra.mxu0 %v514
    %594 = vmatmul.f32.gmra.mxu0 %v392
    %v595 = vpop.f32.mrf.mxu0
    %v596 = vadd.f32 0.0, %v595
    %597 = vdwg.mxu0
    %598 = vmatpush.msra.mxu0 %v575
    %599 = vmatpush.msra.mxu0 %v571
    %600 = vmatpush.msra.mxu0 %v567
    %601 = vmatpush.msra.mxu0 %v563
    %602 = vmatpush.msra.mxu0 %v559
    %603 = vmatpush.msra.mxu0 %v555
    %604 = vmatpush.msra.mxu0 %v551
    %605 = vmatpush.msra.mxu0 %v547
    %606 = vmatpush.msra.mxu0 %v543
    %607 = vmatpush.msra.mxu0 %v539
    %608 = vmatpush.msra.mxu0 %v535
    %609 = vmatpush.msra.mxu0 %v531
    %610 = vmatpush.msra.mxu0 %v527
    %611 = vmatpush.msra.mxu0 %v523
    %612 = vmatpush.msra.mxu0 %v519
    %613 = vmatpush.msra.mxu0 %v515
    %614 = vmatmul.f32.gmra.mxu0 %v392
    %v615 = vpop.f32.mrf.mxu0
    %v616 = vadd.f32 0.0, %v615
    %617 = vdwg.mxu0
    %618 = vmatpush.msra.mxu0 %v576
    %619 = vmatpush.msra.mxu0 %v572
    %620 = vmatpush.msra.mxu0 %v568
    %621 = vmatpush.msra.mxu0 %v564
    %622 = vmatpush.msra.mxu0 %v560
    %623 = vmatpush.msra.mxu0 %v556
    %624 = vmatpush.msra.mxu0 %v552
    %625 = vmatpush.msra.mxu0 %v548
    %626 = vmatpush.msra.mxu0 %v544
    %627 = vmatpush.msra.mxu0 %v540
    %628 = vmatpush.msra.mxu0 %v536
    %629 = vmatpush.msra.mxu0 %v532
    %630 = vmatpush.msra.mxu0 %v528
    %631 = vmatpush.msra.mxu0 %v524
    %632 = vmatpush.msra.mxu0 %v520
    %633 = vmatpush.msra.mxu0 %v516
    %634 = vmatmul.f32.gmra.mxu0 %v392
    %v635 = vpop.f32.mrf.mxu0
    %v636 = vadd.f32 0.0, %v635
    %637 = vdwg.mxu0
    %638 = vmatpush.msra.mxu0 %v577
    %639 = vmatpush.msra.mxu0 %v573
    %640 = vmatpush.msra.mxu0 %v569
    %641 = vmatpush.msra.mxu0 %v565
    %642 = vmatpush.msra.mxu0 %v561
    %643 = vmatpush.msra.mxu0 %v557
    %644 = vmatpush.msra.mxu0 %v553
    %645 = vmatpush.msra.mxu0 %v549
    %646 = vmatpush.msra.mxu0 %v545
    %647 = vmatpush.msra.mxu0 %v541
    %648 = vmatpush.msra.mxu0 %v537
    %649 = vmatpush.msra.mxu0 %v533
    %650 = vmatpush.msra.mxu0 %v529
    %651 = vmatpush.msra.mxu0 %v525
    %652 = vmatpush.msra.mxu0 %v521
    %653 = vmatpush.msra.mxu0 %v517
    %654 = vmatmul.f32.gmra.mxu0 %v392
    %v655 = vpop.f32.mrf.mxu0
    %v656 = vadd.f32 0.0, %v655
    %657 = vdwg.mxu0
    %v658 = vld [vmem:[#allocation6] sm:$0xff]
    %v659 = vld [vmem:[#allocation6 + $0x8] sm:$0xff]
    %v660 = vld [vmem:[#allocation6 + $0x10] sm:$0xff]
    %v661 = vld [vmem:[#allocation6 + $0x18] sm:$0xff]
    %v662 = vld [vmem:[#allocation6 + $0x20] sm:$0xff]
    %v663 = vld [vmem:[#allocation6 + $0x28] sm:$0xff]
    %v664 = vld [vmem:[#allocation6 + $0x30] sm:$0xff]
    %v665 = vld [vmem:[#allocation6 + $0x38] sm:$0xff]
    %v666 = vld [vmem:[#allocation6 + $0x40] sm:$0xff]
    %v667 = vld [vmem:[#allocation6 + $0x48] sm:$0xff]
    %v668 = vld [vmem:[#allocation6 + $0x50] sm:$0xff]
    %v669 = vld [vmem:[#allocation6 + $0x58] sm:$0xff]
    %v670 = vld [vmem:[#allocation6 + $0x60] sm:$0xff]
    %v671 = vld [vmem:[#allocation6 + $0x68] sm:$0xff]
    %v672 = vld [vmem:[#allocation6 + $0x70] sm:$0xff]
    %v673 = vld [vmem:[#allocation6 + $0x78] sm:$0xff]
    %v674 = vld [vmem:[#allocation6 + $0x80] sm:$0xff]
    %v675 = vld [vmem:[#allocation6 + $0x88] sm:$0xff]
    %v676 = vld [vmem:[#allocation6 + $0x90] sm:$0xff]
    %v677 = vld [vmem:[#allocation6 + $0x98] sm:$0xff]
    %v678 = vld [vmem:[#allocation6 + $0xa0] sm:$0xff]
    %v679 = vld [vmem:[#allocation6 + $0xa8] sm:$0xff]
    %v680 = vld [vmem:[#allocation6 + $0xb0] sm:$0xff]
    %v681 = vld [vmem:[#allocation6 + $0xb8] sm:$0xff]
    %v682 = vld [vmem:[#allocation6 + $0xc0] sm:$0xff]
    %v683 = vld [vmem:[#allocation6 + $0xc8] sm:$0xff]
    %v684 = vld [vmem:[#allocation6 + $0xd0] sm:$0xff]
    %v685 = vld [vmem:[#allocation6 + $0xd8] sm:$0xff]
    %v686 = vld [vmem:[#allocation6 + $0xe0] sm:$0xff]
    %v687 = vld [vmem:[#allocation6 + $0xe8] sm:$0xff]
    %v688 = vld [vmem:[#allocation6 + $0xf0] sm:$0xff]
    %v689 = vld [vmem:[#allocation6 + $0xf8] sm:$0xff]
    %v690 = vld [vmem:[#allocation6 + $0x100] sm:$0xff]
    %v691 = vld [vmem:[#allocation6 + $0x108] sm:$0xff]
    %v692 = vld [vmem:[#allocation6 + $0x110] sm:$0xff]
    %v693 = vld [vmem:[#allocation6 + $0x118] sm:$0xff]
    %v694 = vld [vmem:[#allocation6 + $0x120] sm:$0xff]
    %v695 = vld [vmem:[#allocation6 + $0x128] sm:$0xff]
    %v696 = vld [vmem:[#allocation6 + $0x130] sm:$0xff]
    %v697 = vld [vmem:[#allocation6 + $0x138] sm:$0xff]
    %v698 = vld [vmem:[#allocation6 + $0x140] sm:$0xff]
    %v699 = vld [vmem:[#allocation6 + $0x148] sm:$0xff]
    %v700 = vld [vmem:[#allocation6 + $0x150] sm:$0xff]
    %v701 = vld [vmem:[#allocation6 + $0x158] sm:$0xff]
    %v702 = vld [vmem:[#allocation6 + $0x160] sm:$0xff]
    %v703 = vld [vmem:[#allocation6 + $0x168] sm:$0xff]
    %v704 = vld [vmem:[#allocation6 + $0x170] sm:$0xff]
    %v705 = vld [vmem:[#allocation6 + $0x178] sm:$0xff]
    %v706 = vld [vmem:[#allocation6 + $0x180] sm:$0xff]
    %v707 = vld [vmem:[#allocation6 + $0x188] sm:$0xff]
    %v708 = vld [vmem:[#allocation6 + $0x190] sm:$0xff]
    %v709 = vld [vmem:[#allocation6 + $0x198] sm:$0xff]
    %v710 = vld [vmem:[#allocation6 + $0x1a0] sm:$0xff]
    %v711 = vld [vmem:[#allocation6 + $0x1a8] sm:$0xff]
    %v712 = vld [vmem:[#allocation6 + $0x1b0] sm:$0xff]
    %v713 = vld [vmem:[#allocation6 + $0x1b8] sm:$0xff]
    %v714 = vld [vmem:[#allocation6 + $0x1c0] sm:$0xff]
    %v715 = vld [vmem:[#allocation6 + $0x1c8] sm:$0xff]
    %v716 = vld [vmem:[#allocation6 + $0x1d0] sm:$0xff]
    %v717 = vld [vmem:[#allocation6 + $0x1d8] sm:$0xff]
    %v718 = vld [vmem:[#allocation6 + $0x1e0] sm:$0xff]
    %v719 = vld [vmem:[#allocation6 + $0x1e8] sm:$0xff]
    %v720 = vld [vmem:[#allocation6 + $0x1f0] sm:$0xff]
    %v721 = vld [vmem:[#allocation6 + $0x1f8] sm:$0xff]
    %722 = vmatpush.msra.mxu0 %v718
    %723 = vmatpush.msra.mxu0 %v714
    %724 = vmatpush.msra.mxu0 %v710
    %725 = vmatpush.msra.mxu0 %v706
    %726 = vmatpush.msra.mxu0 %v702
    %727 = vmatpush.msra.mxu0 %v698
    %728 = vmatpush.msra.mxu0 %v694
    %729 = vmatpush.msra.mxu0 %v690
    %730 = vmatpush.msra.mxu0 %v686
    %731 = vmatpush.msra.mxu0 %v682
    %732 = vmatpush.msra.mxu0 %v678
    %733 = vmatpush.msra.mxu0 %v674
    %734 = vmatpush.msra.mxu0 %v670
    %735 = vmatpush.msra.mxu0 %v666
    %736 = vmatpush.msra.mxu0 %v662
    %737 = vmatpush.msra.mxu0 %v658
    %738 = vmatmul.f32.gmra.mxu0 %v596
    %v739 = vpop.f32.mrf.mxu0
    %v740 = vadd.f32 0.0, %v739
    %741 = vdwg.mxu0
    %742 = vmatpush.msra.mxu0 %v719
    %743 = vmatpush.msra.mxu0 %v715
    %744 = vmatpush.msra.mxu0 %v711
    %745 = vmatpush.msra.mxu0 %v707
    %746 = vmatpush.msra.mxu0 %v703
    %747 = vmatpush.msra.mxu0 %v699
    %748 = vmatpush.msra.mxu0 %v695
    %749 = vmatpush.msra.mxu0 %v691
    %750 = vmatpush.msra.mxu0 %v687
    %751 = vmatpush.msra.mxu0 %v683
    %752 = vmatpush.msra.mxu0 %v679
    %753 = vmatpush.msra.mxu0 %v675
    %754 = vmatpush.msra.mxu0 %v671
    %755 = vmatpush.msra.mxu0 %v667
    %756 = vmatpush.msra.mxu0 %v663
    %757 = vmatpush.msra.mxu0 %v659
    %758 = vmatmul.f32.gmra.mxu0 %v596
    %v759 = vpop.f32.mrf.mxu0
    %v760 = vadd.f32 0.0, %v759
    %761 = vdwg.mxu0
    %762 = vmatpush.msra.mxu0 %v720
    %763 = vmatpush.msra.mxu0 %v716
    %764 = vmatpush.msra.mxu0 %v712
    %765 = vmatpush.msra.mxu0 %v708
    %766 = vmatpush.msra.mxu0 %v704
    %767 = vmatpush.msra.mxu0 %v700
    %768 = vmatpush.msra.mxu0 %v696
    %769 = vmatpush.msra.mxu0 %v692
    %770 = vmatpush.msra.mxu0 %v688
    %771 = vmatpush.msra.mxu0 %v684
    %772 = vmatpush.msra.mxu0 %v680
    %773 = vmatpush.msra.mxu0 %v676
    %774 = vmatpush.msra.mxu0 %v672
    %775 = vmatpush.msra.mxu0 %v668
    %776 = vmatpush.msra.mxu0 %v664
    %777 = vmatpush.msra.mxu0 %v660
    %778 = vmatmul.f32.gmra.mxu0 %v596
    %v779 = vpop.f32.mrf.mxu0
    %v780 = vadd.f32 0.0, %v779
    %781 = vdwg.mxu0
    %782 = vmatpush.msra.mxu0 %v721
    %783 = vmatpush.msra.mxu0 %v717
    %784 = vmatpush.msra.mxu0 %v713
    %785 = vmatpush.msra.mxu0 %v709
    %786 = vmatpush.msra.mxu0 %v705
    %787 = vmatpush.msra.mxu0 %v701
    %788 = vmatpush.msra.mxu0 %v697
    %789 = vmatpush.msra.mxu0 %v693
    %790 = vmatpush.msra.mxu0 %v689
    %791 = vmatpush.msra.mxu0 %v685
    %792 = vmatpush.msra.mxu0 %v681
    %793 = vmatpush.msra.mxu0 %v677
    %794 = vmatpush.msra.mxu0 %v673
    %795 = vmatpush.msra.mxu0 %v669
    %796 = vmatpush.msra.mxu0 %v665
    %797 = vmatpush.msra.mxu0 %v661
    %798 = vmatmul.f32.gmra.mxu0 %v596
    %v799 = vpop.f32.mrf.mxu0
    %v800 = vadd.f32 0.0, %v799
    %801 = vdwg.mxu0
    %v802 = vld [vmem:[#allocation7] sm:$0xff]
    %v803 = vld [vmem:[#allocation7 + $0x8] sm:$0xff]
    %v804 = vld [vmem:[#allocation7 + $0x10] sm:$0xff]
    %v805 = vld [vmem:[#allocation7 + $0x18] sm:$0xff]
    %v806 = vld [vmem:[#allocation7 + $0x20] sm:$0xff]
    %v807 = vld [vmem:[#allocation7 + $0x28] sm:$0xff]
    %v808 = vld [vmem:[#allocation7 + $0x30] sm:$0xff]
    %v809 = vld [vmem:[#allocation7 + $0x38] sm:$0xff]
    %v810 = vld [vmem:[#allocation7 + $0x40] sm:$0xff]
    %v811 = vld [vmem:[#allocation7 + $0x48] sm:$0xff]
    %v812 = vld [vmem:[#allocation7 + $0x50] sm:$0xff]
    %v813 = vld [vmem:[#allocation7 + $0x58] sm:$0xff]
    %v814 = vld [vmem:[#allocation7 + $0x60] sm:$0xff]
    %v815 = vld [vmem:[#allocation7 + $0x68] sm:$0xff]
    %v816 = vld [vmem:[#allocation7 + $0x70] sm:$0xff]
    %v817 = vld [vmem:[#allocation7 + $0x78] sm:$0xff]
    %v818 = vld [vmem:[#allocation7 + $0x80] sm:$0xff]
    %v819 = vld [vmem:[#allocation7 + $0x88] sm:$0xff]
    %v820 = vld [vmem:[#allocation7 + $0x90] sm:$0xff]
    %v821 = vld [vmem:[#allocation7 + $0x98] sm:$0xff]
    %v822 = vld [vmem:[#allocation7 + $0xa0] sm:$0xff]
    %v823 = vld [vmem:[#allocation7 + $0xa8] sm:$0xff]
    %v824 = vld [vmem:[#allocation7 + $0xb0] sm:$0xff]
    %v825 = vld [vmem:[#allocation7 + $0xb8] sm:$0xff]
    %v826 = vld [vmem:[#allocation7 + $0xc0] sm:$0xff]
    %v827 = vld [vmem:[#allocation7 + $0xc8] sm:$0xff]
    %v828 = vld [vmem:[#allocation7 + $0xd0] sm:$0xff]
    %v829 = vld [vmem:[#allocation7 + $0xd8] sm:$0xff]
    %v830 = vld [vmem:[#allocation7 + $0xe0] sm:$0xff]
    %v831 = vld [vmem:[#allocation7 + $0xe8] sm:$0xff]
    %v832 = vld [vmem:[#allocation7 + $0xf0] sm:$0xff]
    %v833 = vld [vmem:[#allocation7 + $0xf8] sm:$0xff]
    %v834 = vld [vmem:[#allocation7 + $0x100] sm:$0xff]
    %v835 = vld [vmem:[#allocation7 + $0x108] sm:$0xff]
    %v836 = vld [vmem:[#allocation7 + $0x110] sm:$0xff]
    %v837 = vld [vmem:[#allocation7 + $0x118] sm:$0xff]
    %v838 = vld [vmem:[#allocation7 + $0x120] sm:$0xff]
    %v839 = vld [vmem:[#allocation7 + $0x128] sm:$0xff]
    %v840 = vld [vmem:[#allocation7 + $0x130] sm:$0xff]
    %v841 = vld [vmem:[#allocation7 + $0x138] sm:$0xff]
    %v842 = vld [vmem:[#allocation7 + $0x140] sm:$0xff]
    %v843 = vld [vmem:[#allocation7 + $0x148] sm:$0xff]
    %v844 = vld [vmem:[#allocation7 + $0x150] sm:$0xff]
    %v845 = vld [vmem:[#allocation7 + $0x158] sm:$0xff]
    %v846 = vld [vmem:[#allocation7 + $0x160] sm:$0xff]
    %v847 = vld [vmem:[#allocation7 + $0x168] sm:$0xff]
    %v848 = vld [vmem:[#allocation7 + $0x170] sm:$0xff]
    %v849 = vld [vmem:[#allocation7 + $0x178] sm:$0xff]
    %v850 = vld [vmem:[#allocation7 + $0x180] sm:$0xff]
    %v851 = vld [vmem:[#allocation7 + $0x188] sm:$0xff]
    %v852 = vld [vmem:[#allocation7 + $0x190] sm:$0xff]
    %v853 = vld [vmem:[#allocation7 + $0x198] sm:$0xff]
    %v854 = vld [vmem:[#allocation7 + $0x1a0] sm:$0xff]
    %v855 = vld [vmem:[#allocation7 + $0x1a8] sm:$0xff]
    %v856 = vld [vmem:[#allocation7 + $0x1b0] sm:$0xff]
    %v857 = vld [vmem:[#allocation7 + $0x1b8] sm:$0xff]
    %v858 = vld [vmem:[#allocation7 + $0x1c0] sm:$0xff]
    %v859 = vld [vmem:[#allocation7 + $0x1c8] sm:$0xff]
    %v860 = vld [vmem:[#allocation7 + $0x1d0] sm:$0xff]
    %v861 = vld [vmem:[#allocation7 + $0x1d8] sm:$0xff]
    %v862 = vld [vmem:[#allocation7 + $0x1e0] sm:$0xff]
    %v863 = vld [vmem:[#allocation7 + $0x1e8] sm:$0xff]
    %v864 = vld [vmem:[#allocation7 + $0x1f0] sm:$0xff]
    %v865 = vld [vmem:[#allocation7 + $0x1f8] sm:$0xff]
    %866 = vmatpush.msra.mxu0 %v862
    %867 = vmatpush.msra.mxu0 %v858
    %868 = vmatpush.msra.mxu0 %v854
    %869 = vmatpush.msra.mxu0 %v850
    %870 = vmatpush.msra.mxu0 %v846
    %871 = vmatpush.msra.mxu0 %v842
    %872 = vmatpush.msra.mxu0 %v838
    %873 = vmatpush.msra.mxu0 %v834
    %874 = vmatpush.msra.mxu0 %v830
    %875 = vmatpush.msra.mxu0 %v826
    %876 = vmatpush.msra.mxu0 %v822
    %877 = vmatpush.msra.mxu0 %v818
    %878 = vmatpush.msra.mxu0 %v814
    %879 = vmatpush.msra.mxu0 %v810
    %880 = vmatpush.msra.mxu0 %v806
    %881 = vmatpush.msra.mxu0 %v802
    %882 = vmatmul.f32.gmra.mxu0 %v740
    %v883 = vpop.f32.mrf.mxu0
    %v884 = vadd.f32 0.0, %v883
    %885 = vdwg.mxu0
    %886 = vmatpush.msra.mxu0 %v863
    %887 = vmatpush.msra.mxu0 %v859
    %888 = vmatpush.msra.mxu0 %v855
    %889 = vmatpush.msra.mxu0 %v851
    %890 = vmatpush.msra.mxu0 %v847
    %891 = vmatpush.msra.mxu0 %v843
    %892 = vmatpush.msra.mxu0 %v839
    %893 = vmatpush.msra.mxu0 %v835
    %894 = vmatpush.msra.mxu0 %v831
    %895 = vmatpush.msra.mxu0 %v827
    %896 = vmatpush.msra.mxu0 %v823
    %897 = vmatpush.msra.mxu0 %v819
    %898 = vmatpush.msra.mxu0 %v815
    %899 = vmatpush.msra.mxu0 %v811
    %900 = vmatpush.msra.mxu0 %v807
    %901 = vmatpush.msra.mxu0 %v803
    %902 = vmatmul.f32.gmra.mxu0 %v740
    %v903 = vpop.f32.mrf.mxu0
    %v904 = vadd.f32 0.0, %v903
    %905 = vdwg.mxu0
    %906 = vmatpush.msra.mxu0 %v864
    %907 = vmatpush.msra.mxu0 %v860
    %908 = vmatpush.msra.mxu0 %v856
    %909 = vmatpush.msra.mxu0 %v852
    %910 = vmatpush.msra.mxu0 %v848
    %911 = vmatpush.msra.mxu0 %v844
    %912 = vmatpush.msra.mxu0 %v840
    %913 = vmatpush.msra.mxu0 %v836
    %914 = vmatpush.msra.mxu0 %v832
    %915 = vmatpush.msra.mxu0 %v828
    %916 = vmatpush.msra.mxu0 %v824
    %917 = vmatpush.msra.mxu0 %v820
    %918 = vmatpush.msra.mxu0 %v816
    %919 = vmatpush.msra.mxu0 %v812
    %920 = vmatpush.msra.mxu0 %v808
    %921 = vmatpush.msra.mxu0 %v804
    %922 = vmatmul.f32.gmra.mxu0 %v740
    %v923 = vpop.f32.mrf.mxu0
    %v924 = vadd.f32 0.0, %v923
    %925 = vdwg.mxu0
    %926 = vmatpush.msra.mxu0 %v865
    %927 = vmatpush.msra.mxu0 %v861
    %928 = vmatpush.msra.mxu0 %v857
    %929 = vmatpush.msra.mxu0 %v853
    %930 = vmatpush.msra.mxu0 %v849
    %931 = vmatpush.msra.mxu0 %v845
    %932 = vmatpush.msra.mxu0 %v841
    %933 = vmatpush.msra.mxu0 %v837
    %934 = vmatpush.msra.mxu0 %v833
    %935 = vmatpush.msra.mxu0 %v829
    %936 = vmatpush.msra.mxu0 %v825
    %937 = vmatpush.msra.mxu0 %v821
    %938 = vmatpush.msra.mxu0 %v817
    %939 = vmatpush.msra.mxu0 %v813
    %940 = vmatpush.msra.mxu0 %v809
    %941 = vmatpush.msra.mxu0 %v805
    %942 = vmatmul.f32.gmra.mxu0 %v740
    %v943 = vpop.f32.mrf.mxu0
    %v944 = vadd.f32 0.0, %v943
    %945 = vdwg.mxu0
    %v946 = vld [vmem:[%s5] sm:$0xff]
    %v947 = vld [vmem:[%s6] sm:$0xff]
    %949 = vset.pattern.permute.xlu0 0
    %950 = vperm.xlu0 %949, %v947
    %v951 = vpop.permute.xlu0 %950
    %vm953 = vcmask 64512
    %v955 = vsel %vm953, %v946, 0
    %957 = vmatpush.msra.mxu0 0.0
    %958 = vmatpush.msra.mxu0 0.0
    %959 = vmatpush.msra.mxu0 0.0
    %960 = vmatpush.msra.mxu0 0.0
    %961 = vmatpush.msra.mxu0 0.0
    %962 = vmatpush.msra.mxu0 0.0
    %963 = vmatpush.msra.mxu0 0.0
    %964 = vmatpush.msra.mxu0 0.0
    %965 = vmatpush.msra.mxu0 0.0
    %966 = vmatpush.msra.mxu0 0.0
    %967 = vmatpush.msra.mxu0 0.0
    %968 = vmatpush.msra.mxu0 0.0
    %969 = vmatpush.msra.mxu0 0.0
    %970 = vmatpush.msra.mxu0 0.0
    %971 = vmatpush.msra.mxu0 0.0
    %972 = vmatpush.msra.mxu0 %v884
    %973 = vmatmul.f32.gmra.mxu0 %v955
    %v974 = vpop.f32.mrf.mxu0
    %v975 = vadd.f32 %v951, %v974
    %976 = vdwg.mxu0
    %v977 = vmul.f32 %v975, 0.2
    %v978 = vmax.f32 %v975, %v977
    %v979 = vld [vmem:[%s7] sm:$0xff]
    %v980 = vld [vmem:[%s7 + $0x8] sm:$0xff]
    %v981 = vld [vmem:[%s7 + $0x10] sm:$0xff]
    %v982 = vld [vmem:[%s8] sm:$0xff]
    %v983 = vld [vmem:[%s8 + $0x8] sm:$0xff]
    %v984 = vld [vmem:[%s8 + $0x10] sm:$0xff]
    %986 = vset.pattern.permute.xlu0 0
    %987 = vperm.xlu0 %986, %v982
    %v988 = vpop.permute.xlu0 %987
    %991 = vset.pattern.permute.xlu0 0
    %992 = vperm.xlu0 %991, %v983
    %v993 = vpop.permute.xlu0 %992
    %996 = vset.pattern.permute.xlu0 0
    %997 = vperm.xlu0 %996, %v984
    %v998 = vpop.permute.xlu0 %997
    %v1001 = vsel %vm178, %v979, 0
    %v1004 = vsel %vm178, %v980, 0
    %v1007 = vsel %vm178, %v981, 0
    %1009 = vmatpush.msra.mxu0 0.0
    %1010 = vmatpush.msra.mxu0 0.0
    %1011 = vmatpush.msra.mxu0 0.0
    %1012 = vmatpush.msra.mxu0 0.0
    %1013 = vmatpush.msra.mxu0 0.0
    %1014 = vmatpush.msra.mxu0 0.0
    %1015 = vmatpush.msra.mxu0 0.0
    %1016 = vmatpush.msra.mxu0 0.0
    %1017 = vmatpush.msra.mxu0 0.0
    %1018 = vmatpush.msra.mxu0 0.0
    %1019 = vmatpush.msra.mxu0 0.0
    %1020 = vmatpush.msra.mxu0 0.0
    %1021 = vmatpush.msra.mxu0 0.0
    %1022 = vmatpush.msra.mxu0 %v944
    %1023 = vmatpush.msra.mxu0 %v924
    %1024 = vmatpush.msra.mxu0 %v904
    %1025 = vmatmul.f32.gmra.mxu0 %v1001
    %v1026 = vpop.f32.mrf.mxu0
    %v1027 = vadd.f32 %v988, %v1026
    %1028 = vmatmul.f32.gmra.mxu0 %v1004
    %v1029 = vpop.f32.mrf.mxu0
    %v1030 = vadd.f32 %v993, %v1029
    %1031 = vmatmul.f32.gmra.mxu0 %v1007
    %v1032 = vpop.f32.mrf.mxu0
    %v1033 = vadd.f32 %v998, %v1032
    %1034 = vdwg.mxu0
    %v1035 = vmul.f32 %v1027, 0.2
    %v1036 = vmul.f32 %v1030, 0.2
    %v1037 = vmul.f32 %v1033, 0.2
    %v1038 = vmax.f32 %v1027, %v1035
    %v1039 = vmax.f32 %v1030, %v1036
    %v1040 = vmax.f32 %v1033, %v1037
    %v1041 = vld [vmem:[#allocation12] sm:$0xff]
    %v1042 = vld [vmem:[#allocation12 + $0x8] sm:$0xff]
    %v1043 = vld [vmem:[#allocation12 + $0x10] sm:$0xff]
    %v1044 = vld [vmem:[#allocation12 + $0x18] sm:$0xff]
    %v1045 = vld [vmem:[#allocation12 + $0x20] sm:$0xff]
    %v1046 = vld [vmem:[#allocation12 + $0x28] sm:$0xff]
    %v1047 = vld [vmem:[#allocation12 + $0x30] sm:$0xff]
    %v1048 = vld [vmem:[#allocation12 + $0x38] sm:$0xff]
    %v1049 = vld [vmem:[#allocation12 + $0x40] sm:$0xff]
    %v1050 = vld [vmem:[#allocation12 + $0x48] sm:$0xff]
    %v1051 = vld [vmem:[#allocation12 + $0x50] sm:$0xff]
    %v1052 = vld [vmem:[#allocation12 + $0x58] sm:$0xff]
    %v1053 = vld [vmem:[#allocation12 + $0x60] sm:$0xff]
    %v1054 = vld [vmem:[#allocation12 + $0x68] sm:$0xff]
    %v1055 = vld [vmem:[#allocation12 + $0x70] sm:$0xff]
    %v1056 = vld [vmem:[#allocation12 + $0x78] sm:$0xff]
    %v1057 = vld [vmem:[#allocation12 + $0x80] sm:$0xff]
    %v1058 = vld [vmem:[#allocation12 + $0x88] sm:$0xff]
    %v1059 = vld [vmem:[#allocation12 + $0x90] sm:$0xff]
    %v1060 = vld [vmem:[#allocation12 + $0x98] sm:$0xff]
    %v1061 = vld [vmem:[#allocation12 + $0xa0] sm:$0xff]
    %v1062 = vld [vmem:[#allocation12 + $0xa8] sm:$0xff]
    %v1063 = vld [vmem:[#allocation12 + $0xb0] sm:$0xff]
    %v1064 = vld [vmem:[#allocation12 + $0xb8] sm:$0xff]
    %v1065 = vld [vmem:[#allocation12 + $0xc0] sm:$0xff]
    %v1066 = vld [vmem:[#allocation12 + $0xc8] sm:$0xff]
    %v1067 = vld [vmem:[#allocation12 + $0xd0] sm:$0xff]
    %v1068 = vld [vmem:[#allocation12 + $0xd8] sm:$0xff]
    %v1069 = vld [vmem:[#allocation12 + $0xe0] sm:$0xff]
    %v1070 = vld [vmem:[#allocation12 + $0xe8] sm:$0xff]
    %v1071 = vld [vmem:[#allocation12 + $0xf0] sm:$0xff]
    %v1072 = vld [vmem:[#allocation12 + $0xf8] sm:$0xff]
    %v1073 = vld [vmem:[#allocation12 + $0x100] sm:$0xff]
    %v1074 = vld [vmem:[#allocation12 + $0x108] sm:$0xff]
    %v1075 = vld [vmem:[#allocation12 + $0x110] sm:$0xff]
    %v1076 = vld [vmem:[#allocation12 + $0x118] sm:$0xff]
    %v1077 = vld [vmem:[#allocation12 + $0x120] sm:$0xff]
    %v1078 = vld [vmem:[#allocation12 + $0x128] sm:$0xff]
    %v1079 = vld [vmem:[#allocation12 + $0x130] sm:$0xff]
    %v1080 = vld [vmem:[#allocation12 + $0x138] sm:$0xff]
    %v1081 = vld [vmem:[#allocation12 + $0x140] sm:$0xff]
    %v1082 = vld [vmem:[#allocation12 + $0x148] sm:$0xff]
    %v1083 = vld [vmem:[#allocation12 + $0x150] sm:$0xff]
    %v1084 = vld [vmem:[#allocation12 + $0x158] sm:$0xff]
    %v1085 = vld [vmem:[#allocation12 + $0x160] sm:$0xff]
    %v1086 = vld [vmem:[#allocation12 + $0x168] sm:$0xff]
    %v1087 = vld [vmem:[#allocation12 + $0x170] sm:$0xff]
    %v1088 = vld [vmem:[#allocation12 + $0x178] sm:$0xff]
    %v1089 = vld [vmem:[#allocation12 + $0x180] sm:$0xff]
    %v1090 = vld [vmem:[#allocation12 + $0x188] sm:$0xff]
    %v1091 = vld [vmem:[#allocation12 + $0x190] sm:$0xff]
    %v1092 = vld [vmem:[#allocation12 + $0x198] sm:$0xff]
    %v1093 = vld [vmem:[#allocation12 + $0x1a0] sm:$0xff]
    %v1094 = vld [vmem:[#allocation12 + $0x1a8] sm:$0xff]
    %v1095 = vld [vmem:[#allocation12 + $0x1b0] sm:$0xff]
    %v1096 = vld [vmem:[#allocation12 + $0x1b8] sm:$0xff]
    %v1097 = vld [vmem:[#allocation12 + $0x1c0] sm:$0xff]
    %v1098 = vld [vmem:[#allocation12 + $0x1c8] sm:$0xff]
    %v1099 = vld [vmem:[#allocation12 + $0x1d0] sm:$0xff]
    %v1100 = vld [vmem:[#allocation12 + $0x1d8] sm:$0xff]
    %v1101 = vld [vmem:[#allocation12 + $0x1e0] sm:$0xff]
    %v1102 = vld [vmem:[#allocation12 + $0x1e8] sm:$0xff]
    %v1103 = vld [vmem:[#allocation12 + $0x1f0] sm:$0xff]
    %v1104 = vld [vmem:[#allocation12 + $0x1f8] sm:$0xff]
    %1105 = vmatpush.msra.mxu0 %v1056
    %1106 = vmatpush.msra.mxu0 %v1055
    %1107 = vmatpush.msra.mxu0 %v1054
    %1108 = vmatpush.msra.mxu0 %v1053
    %1109 = vmatpush.msra.mxu0 %v1052
    %1110 = vmatpush.msra.mxu0 %v1051
    %1111 = vmatpush.msra.mxu0 %v1050
    %1112 = vmatpush.msra.mxu0 %v1049
    %1113 = vmatpush.msra.mxu0 %v1048
    %1114 = vmatpush.msra.mxu0 %v1047
    %1115 = vmatpush.msra.mxu0 %v1046
    %1116 = vmatpush.msra.mxu0 %v1045
    %1117 = vmatpush.msra.mxu0 %v1044
    %1118 = vmatpush.msra.mxu0 %v1043
    %1119 = vmatpush.msra.mxu0 %v1042
    %1120 = vmatpush.msra.mxu0 %v1041
    %1121 = vmatmul.f32.gmra.mxu0 %v978
    %v1122 = vpop.f32.mrf.mxu0
    %v1123 = vadd.f32 0.0, %v1122
    %1124 = vdwg.mxu0
    %1125 = vmatpush.msra.mxu0 %v1072
    %1126 = vmatpush.msra.mxu0 %v1071
    %1127 = vmatpush.msra.mxu0 %v1070
    %1128 = vmatpush.msra.mxu0 %v1069
    %1129 = vmatpush.msra.mxu0 %v1068
    %1130 = vmatpush.msra.mxu0 %v1067
    %1131 = vmatpush.msra.mxu0 %v1066
    %1132 = vmatpush.msra.mxu0 %v1065
    %1133 = vmatpush.msra.mxu0 %v1064
    %1134 = vmatpush.msra.mxu0 %v1063
    %1135 = vmatpush.msra.mxu0 %v1062
    %1136 = vmatpush.msra.mxu0 %v1061
    %1137 = vmatpush.msra.mxu0 %v1060
    %1138 = vmatpush.msra.mxu0 %v1059
    %1139 = vmatpush.msra.mxu0 %v1058
    %1140 = vmatpush.msra.mxu0 %v1057
    %1141 = vmatmul.f32.gmra.mxu0 %v1038
    %v1142 = vpop.f32.mrf.mxu0
    %v1143 = vadd.f32 %v1123, %v1142
    %1144 = vdwg.mxu0
    %1145 = vmatpush.msra.mxu0 %v1088
    %1146 = vmatpush.msra.mxu0 %v1087
    %1147 = vmatpush.msra.mxu0 %v1086
    %1148 = vmatpush.msra.mxu0 %v1085
    %1149 = vmatpush.msra.mxu0 %v1084
    %1150 = vmatpush.msra.mxu0 %v1083
    %1151 = vmatpush.msra.mxu0 %v1082
    %1152 = vmatpush.msra.mxu0 %v1081
    %1153 = vmatpush.msra.mxu0 %v1080
    %1154 = vmatpush.msra.mxu0 %v1079
    %1155 = vmatpush.msra.mxu0 %v1078
    %1156 = vmatpush.msra.mxu0 %v1077
    %1157 = vmatpush.msra.mxu0 %v1076
    %1158 = vmatpush.msra.mxu0 %v1075
    %1159 = vmatpush.msra.mxu0 %v1074
    %1160 = vmatpush.msra.mxu0 %v1073
    %1161 = vmatmul.f32.gmra.mxu0 %v1039
    %v1162 = vpop.f32.mrf.mxu0
    %v1163 = vadd.f32 %v1143, %v1162
    %1164 = vdwg.mxu0
    %1165 = vmatpush.msra.mxu0 %v1104
    %1166 = vmatpush.msra.mxu0 %v1103
    %1167 = vmatpush.msra.mxu0 %v1102
    %1168 = vmatpush.msra.mxu0 %v1101
    %1169 = vmatpush.msra.mxu0 %v1100
    %1170 = vmatpush.msra.mxu0 %v1099
    %1171 = vmatpush.msra.mxu0 %v1098
    %1172 = vmatpush.msra.mxu0 %v1097
    %1173 = vmatpush.msra.mxu0 %v1096
    %1174 = vmatpush.msra.mxu0 %v1095
    %1175 = vmatpush.msra.mxu0 %v1094
    %1176 = vmatpush.msra.mxu0 %v1093
    %1177 = vmatpush.msra.mxu0 %v1092
    %1178 = vmatpush.msra.mxu0 %v1091
    %1179 = vmatpush.msra.mxu0 %v1090
    %1180 = vmatpush.msra.mxu0 %v1089
    %1181 = vmatmul.f32.gmra.mxu0 %v1040
    %v1182 = vpop.f32.mrf.mxu0
    %v1183 = vadd.f32 %v1163, %v1182
    %1184 = vdwg.mxu0
    %1185 = vmatpush.msra.mxu0 0.0
    %1186 = vmatpush.msra.mxu0 0.0
    %1187 = vmatpush.msra.mxu0 0.0
    %1188 = vmatpush.msra.mxu0 0.0
    %1189 = vmatpush.msra.mxu0 0.0
    %1190 = vmatpush.msra.mxu0 0.0
    %1191 = vmatpush.msra.mxu0 0.0
    %1192 = vmatpush.msra.mxu0 0.0
    %1193 = vmatpush.msra.mxu0 0.0
    %1194 = vmatpush.msra.mxu0 0.0
    %1195 = vmatpush.msra.mxu0 0.0
    %1196 = vmatpush.msra.mxu0 0.0
    %1197 = vmatpush.msra.mxu0 0.0
    %1198 = vmatpush.msra.mxu0 %v800
    %1199 = vmatpush.msra.mxu0 %v780
    %1200 = vmatpush.msra.mxu0 %v760
    %1201 = vmatmul.f32.gmra.mxu0 %v1001
    %v1202 = vpop.f32.mrf.mxu0
    %v1203 = vadd.f32 %v988, %v1202
    %1204 = vmatmul.f32.gmra.mxu0 %v1004
    %v1205 = vpop.f32.mrf.mxu0
    %v1206 = vadd.f32 %v993, %v1205
    %1207 = vmatmul.f32.gmra.mxu0 %v1007
    %v1208 = vpop.f32.mrf.mxu0
    %v1209 = vadd.f32 %v998, %v1208
    %1210 = vdwg.mxu0
    %v1211 = vmul.f32 %v1203, 0.2
    %v1212 = vmul.f32 %v1206, 0.2
    %v1213 = vmul.f32 %v1209, 0.2
    %v1214 = vmax.f32 %v1203, %v1211
    %v1215 = vmax.f32 %v1206, %v1212
    %v1216 = vmax.f32 %v1209, %v1213
    %v1217 = vld [vmem:[#allocation10] sm:$0xff]
    %v1218 = vld [vmem:[#allocation10 + $0x8] sm:$0xff]
    %v1219 = vld [vmem:[#allocation10 + $0x10] sm:$0xff]
    %v1220 = vld [vmem:[#allocation10 + $0x18] sm:$0xff]
    %v1221 = vld [vmem:[#allocation10 + $0x20] sm:$0xff]
    %v1222 = vld [vmem:[#allocation10 + $0x28] sm:$0xff]
    %v1223 = vld [vmem:[#allocation10 + $0x30] sm:$0xff]
    %v1224 = vld [vmem:[#allocation10 + $0x38] sm:$0xff]
    %v1225 = vld [vmem:[#allocation10 + $0x40] sm:$0xff]
    %v1226 = vld [vmem:[#allocation10 + $0x48] sm:$0xff]
    %v1227 = vld [vmem:[#allocation10 + $0x50] sm:$0xff]
    %v1228 = vld [vmem:[#allocation10 + $0x58] sm:$0xff]
    %v1229 = vld [vmem:[#allocation10 + $0x60] sm:$0xff]
    %v1230 = vld [vmem:[#allocation10 + $0x68] sm:$0xff]
    %v1231 = vld [vmem:[#allocation10 + $0x70] sm:$0xff]
    %v1232 = vld [vmem:[#allocation10 + $0x78] sm:$0xff]
    %v1233 = vld [vmem:[#allocation10 + $0x80] sm:$0xff]
    %v1234 = vld [vmem:[#allocation10 + $0x88] sm:$0xff]
    %v1235 = vld [vmem:[#allocation10 + $0x90] sm:$0xff]
    %v1236 = vld [vmem:[#allocation10 + $0x98] sm:$0xff]
    %v1237 = vld [vmem:[#allocation10 + $0xa0] sm:$0xff]
    %v1238 = vld [vmem:[#allocation10 + $0xa8] sm:$0xff]
    %v1239 = vld [vmem:[#allocation10 + $0xb0] sm:$0xff]
    %v1240 = vld [vmem:[#allocation10 + $0xb8] sm:$0xff]
    %v1241 = vld [vmem:[#allocation10 + $0xc0] sm:$0xff]
    %v1242 = vld [vmem:[#allocation10 + $0xc8] sm:$0xff]
    %v1243 = vld [vmem:[#allocation10 + $0xd0] sm:$0xff]
    %v1244 = vld [vmem:[#allocation10 + $0xd8] sm:$0xff]
    %v1245 = vld [vmem:[#allocation10 + $0xe0] sm:$0xff]
    %v1246 = vld [vmem:[#allocation10 + $0xe8] sm:$0xff]
    %v1247 = vld [vmem:[#allocation10 + $0xf0] sm:$0xff]
    %v1248 = vld [vmem:[#allocation10 + $0xf8] sm:$0xff]
    %v1249 = vld [vmem:[#allocation10 + $0x100] sm:$0xff]
    %v1250 = vld [vmem:[#allocation10 + $0x108] sm:$0xff]
    %v1251 = vld [vmem:[#allocation10 + $0x110] sm:$0xff]
    %v1252 = vld [vmem:[#allocation10 + $0x118] sm:$0xff]
    %v1253 = vld [vmem:[#allocation10 + $0x120] sm:$0xff]
    %v1254 = vld [vmem:[#allocation10 + $0x128] sm:$0xff]
    %v1255 = vld [vmem:[#allocation10 + $0x130] sm:$0xff]
    %v1256 = vld [vmem:[#allocation10 + $0x138] sm:$0xff]
    %v1257 = vld [vmem:[#allocation10 + $0x140] sm:$0xff]
    %v1258 = vld [vmem:[#allocation10 + $0x148] sm:$0xff]
    %v1259 = vld [vmem:[#allocation10 + $0x150] sm:$0xff]
    %v1260 = vld [vmem:[#allocation10 + $0x158] sm:$0xff]
    %v1261 = vld [vmem:[#allocation10 + $0x160] sm:$0xff]
    %v1262 = vld [vmem:[#allocation10 + $0x168] sm:$0xff]
    %v1263 = vld [vmem:[#allocation10 + $0x170] sm:$0xff]
    %v1264 = vld [vmem:[#allocation10 + $0x178] sm:$0xff]
    %v1265 = vld [vmem:[#allocation10 + $0x180] sm:$0xff]
    %v1266 = vld [vmem:[#allocation10 + $0x188] sm:$0xff]
    %v1267 = vld [vmem:[#allocation10 + $0x190] sm:$0xff]
    %v1268 = vld [vmem:[#allocation10 + $0x198] sm:$0xff]
    %v1269 = vld [vmem:[#allocation10 + $0x1a0] sm:$0xff]
    %v1270 = vld [vmem:[#allocation10 + $0x1a8] sm:$0xff]
    %v1271 = vld [vmem:[#allocation10 + $0x1b0] sm:$0xff]
    %v1272 = vld [vmem:[#allocation10 + $0x1b8] sm:$0xff]
    %v1273 = vld [vmem:[#allocation10 + $0x1c0] sm:$0xff]
    %v1274 = vld [vmem:[#allocation10 + $0x1c8] sm:$0xff]
    %v1275 = vld [vmem:[#allocation10 + $0x1d0] sm:$0xff]
    %v1276 = vld [vmem:[#allocation10 + $0x1d8] sm:$0xff]
    %v1277 = vld [vmem:[#allocation10 + $0x1e0] sm:$0xff]
    %v1278 = vld [vmem:[#allocation10 + $0x1e8] sm:$0xff]
    %v1279 = vld [vmem:[#allocation10 + $0x1f0] sm:$0xff]
    %v1280 = vld [vmem:[#allocation10 + $0x1f8] sm:$0xff]
    %1281 = vmatpush.msra.mxu0 %v1232
    %1282 = vmatpush.msra.mxu0 %v1231
    %1283 = vmatpush.msra.mxu0 %v1230
    %1284 = vmatpush.msra.mxu0 %v1229
    %1285 = vmatpush.msra.mxu0 %v1228
    %1286 = vmatpush.msra.mxu0 %v1227
    %1287 = vmatpush.msra.mxu0 %v1226
    %1288 = vmatpush.msra.mxu0 %v1225
    %1289 = vmatpush.msra.mxu0 %v1224
    %1290 = vmatpush.msra.mxu0 %v1223
    %1291 = vmatpush.msra.mxu0 %v1222
    %1292 = vmatpush.msra.mxu0 %v1221
    %1293 = vmatpush.msra.mxu0 %v1220
    %1294 = vmatpush.msra.mxu0 %v1219
    %1295 = vmatpush.msra.mxu0 %v1218
    %1296 = vmatpush.msra.mxu0 %v1217
    %1297 = vmatmul.f32.gmra.mxu0 %v1183
    %v1298 = vpop.f32.mrf.mxu0
    %v1299 = vadd.f32 0.0, %v1298
    %1300 = vdwg.mxu0
    %1301 = vmatpush.msra.mxu0 %v1248
    %1302 = vmatpush.msra.mxu0 %v1247
    %1303 = vmatpush.msra.mxu0 %v1246
    %1304 = vmatpush.msra.mxu0 %v1245
    %1305 = vmatpush.msra.mxu0 %v1244
    %1306 = vmatpush.msra.mxu0 %v1243
    %1307 = vmatpush.msra.mxu0 %v1242
    %1308 = vmatpush.msra.mxu0 %v1241
    %1309 = vmatpush.msra.mxu0 %v1240
    %1310 = vmatpush.msra.mxu0 %v1239
    %1311 = vmatpush.msra.mxu0 %v1238
    %1312 = vmatpush.msra.mxu0 %v1237
    %1313 = vmatpush.msra.mxu0 %v1236
    %1314 = vmatpush.msra.mxu0 %v1235
    %1315 = vmatpush.msra.mxu0 %v1234
    %1316 = vmatpush.msra.mxu0 %v1233
    %1317 = vmatmul.f32.gmra.mxu0 %v1214
    %v1318 = vpop.f32.mrf.mxu0
    %v1319 = vadd.f32 %v1299, %v1318
    %1320 = vdwg.mxu0
    %1321 = vmatpush.msra.mxu0 %v1264
    %1322 = vmatpush.msra.mxu0 %v1263
    %1323 = vmatpush.msra.mxu0 %v1262
    %1324 = vmatpush.msra.mxu0 %v1261
    %1325 = vmatpush.msra.mxu0 %v1260
    %1326 = vmatpush.msra.mxu0 %v1259
    %1327 = vmatpush.msra.mxu0 %v1258
    %1328 = vmatpush.msra.mxu0 %v1257
    %1329 = vmatpush.msra.mxu0 %v1256
    %1330 = vmatpush.msra.mxu0 %v1255
    %1331 = vmatpush.msra.mxu0 %v1254
    %1332 = vmatpush.msra.mxu0 %v1253
    %1333 = vmatpush.msra.mxu0 %v1252
    %1334 = vmatpush.msra.mxu0 %v1251
    %1335 = vmatpush.msra.mxu0 %v1250
    %1336 = vmatpush.msra.mxu0 %v1249
    %1337 = vmatmul.f32.gmra.mxu0 %v1215
    %v1338 = vpop.f32.mrf.mxu0
    %v1339 = vadd.f32 %v1319, %v1338
    %1340 = vdwg.mxu0
    %1341 = vmatpush.msra.mxu0 %v1280
    %1342 = vmatpush.msra.mxu0 %v1279
    %1343 = vmatpush.msra.mxu0 %v1278
    %1344 = vmatpush.msra.mxu0 %v1277
    %1345 = vmatpush.msra.mxu0 %v1276
    %1346 = vmatpush.msra.mxu0 %v1275
    %1347 = vmatpush.msra.mxu0 %v1274
    %1348 = vmatpush.msra.mxu0 %v1273
    %1349 = vmatpush.msra.mxu0 %v1272
    %1350 = vmatpush.msra.mxu0 %v1271
    %1351 = vmatpush.msra.mxu0 %v1270
    %1352 = vmatpush.msra.mxu0 %v1269
    %1353 = vmatpush.msra.mxu0 %v1268
    %1354 = vmatpush.msra.mxu0 %v1267
    %1355 = vmatpush.msra.mxu0 %v1266
    %1356 = vmatpush.msra.mxu0 %v1265
    %1357 = vmatmul.f32.gmra.mxu0 %v1216
    %v1358 = vpop.f32.mrf.mxu0
    %v1359 = vadd.f32 %v1339, %v1358
    %1360 = vdwg.mxu0
    %1361 = vmatpush.msra.mxu0 0.0
    %1362 = vmatpush.msra.mxu0 0.0
    %1363 = vmatpush.msra.mxu0 0.0
    %1364 = vmatpush.msra.mxu0 0.0
    %1365 = vmatpush.msra.mxu0 0.0
    %1366 = vmatpush.msra.mxu0 0.0
    %1367 = vmatpush.msra.mxu0 0.0
    %1368 = vmatpush.msra.mxu0 0.0
    %1369 = vmatpush.msra.mxu0 0.0
    %1370 = vmatpush.msra.mxu0 0.0
    %1371 = vmatpush.msra.mxu0 0.0
    %1372 = vmatpush.msra.mxu0 0.0
    %1373 = vmatpush.msra.mxu0 0.0
    %1374 = vmatpush.msra.mxu0 %v656
    %1375 = vmatpush.msra.mxu0 %v636
    %1376 = vmatpush.msra.mxu0 %v616
    %1377 = vmatmul.f32.gmra.mxu0 %v1001
    %v1378 = vpop.f32.mrf.mxu0
    %v1379 = vadd.f32 %v988, %v1378
    %1380 = vmatmul.f32.gmra.mxu0 %v1004
    %v1381 = vpop.f32.mrf.mxu0
    %v1382 = vadd.f32 %v993, %v1381
    %1383 = vmatmul.f32.gmra.mxu0 %v1007
    %v1384 = vpop.f32.mrf.mxu0
    %v1385 = vadd.f32 %v998, %v1384
    %1386 = vdwg.mxu0
    %v1387 = vmul.f32 %v1379, 0.2
    %v1388 = vmul.f32 %v1382, 0.2
    %v1389 = vmul.f32 %v1385, 0.2
    %v1390 = vmax.f32 %v1379, %v1387
    %v1391 = vmax.f32 %v1382, %v1388
    %v1392 = vmax.f32 %v1385, %v1389
    %v1393 = vld [vmem:[%s14] sm:$0xff]
    %v1394 = vld [vmem:[%s14 + $0x8] sm:$0xff]
    %v1395 = vld [vmem:[%s14 + $0x10] sm:$0xff]
    %v1396 = vld [vmem:[%s14 + $0x18] sm:$0xff]
    %v1397 = vld [vmem:[%s14 + $0x20] sm:$0xff]
    %v1398 = vld [vmem:[%s14 + $0x28] sm:$0xff]
    %v1399 = vld [vmem:[%s14 + $0x30] sm:$0xff]
    %v1400 = vld [vmem:[%s14 + $0x38] sm:$0xff]
    %v1401 = vld [vmem:[%s14 + $0x40] sm:$0xff]
    %v1402 = vld [vmem:[%s14 + $0x48] sm:$0xff]
    %v1403 = vld [vmem:[%s14 + $0x50] sm:$0xff]
    %v1404 = vld [vmem:[%s14 + $0x58] sm:$0xff]
    %v1405 = vld [vmem:[%s14 + $0x60] sm:$0xff]
    %v1406 = vld [vmem:[%s14 + $0x68] sm:$0xff]
    %v1407 = vld [vmem:[%s14 + $0x70] sm:$0xff]
    %v1408 = vld [vmem:[%s14 + $0x78] sm:$0xff]
    %v1409 = vld [vmem:[%s14 + $0x80] sm:$0xff]
    %v1410 = vld [vmem:[%s14 + $0x88] sm:$0xff]
    %v1411 = vld [vmem:[%s14 + $0x90] sm:$0xff]
    %v1412 = vld [vmem:[%s14 + $0x98] sm:$0xff]
    %v1413 = vld [vmem:[%s14 + $0xa0] sm:$0xff]
    %v1414 = vld [vmem:[%s14 + $0xa8] sm:$0xff]
    %v1415 = vld [vmem:[%s14 + $0xb0] sm:$0xff]
    %v1416 = vld [vmem:[%s14 + $0xb8] sm:$0xff]
    %v1417 = vld [vmem:[%s14 + $0xc0] sm:$0xff]
    %v1418 = vld [vmem:[%s14 + $0xc8] sm:$0xff]
    %v1419 = vld [vmem:[%s14 + $0xd0] sm:$0xff]
    %v1420 = vld [vmem:[%s14 + $0xd8] sm:$0xff]
    %v1421 = vld [vmem:[%s14 + $0xe0] sm:$0xff]
    %v1422 = vld [vmem:[%s14 + $0xe8] sm:$0xff]
    %v1423 = vld [vmem:[%s14 + $0xf0] sm:$0xff]
    %v1424 = vld [vmem:[%s14 + $0xf8] sm:$0xff]
    %v1425 = vld [vmem:[%s14 + $0x100] sm:$0xff]
    %v1426 = vld [vmem:[%s14 + $0x108] sm:$0xff]
    %v1427 = vld [vmem:[%s14 + $0x110] sm:$0xff]
    %v1428 = vld [vmem:[%s14 + $0x118] sm:$0xff]
    %v1429 = vld [vmem:[%s14 + $0x120] sm:$0xff]
    %v1430 = vld [vmem:[%s14 + $0x128] sm:$0xff]
    %v1431 = vld [vmem:[%s14 + $0x130] sm:$0xff]
    %v1432 = vld [vmem:[%s14 + $0x138] sm:$0xff]
    %v1433 = vld [vmem:[%s14 + $0x140] sm:$0xff]
    %v1434 = vld [vmem:[%s14 + $0x148] sm:$0xff]
    %v1435 = vld [vmem:[%s14 + $0x150] sm:$0xff]
    %v1436 = vld [vmem:[%s14 + $0x158] sm:$0xff]
    %v1437 = vld [vmem:[%s14 + $0x160] sm:$0xff]
    %v1438 = vld [vmem:[%s14 + $0x168] sm:$0xff]
    %v1439 = vld [vmem:[%s14 + $0x170] sm:$0xff]
    %v1440 = vld [vmem:[%s14 + $0x178] sm:$0xff]
    %v1441 = vld [vmem:[%s14 + $0x180] sm:$0xff]
    %v1442 = vld [vmem:[%s14 + $0x188] sm:$0xff]
    %v1443 = vld [vmem:[%s14 + $0x190] sm:$0xff]
    %v1444 = vld [vmem:[%s14 + $0x198] sm:$0xff]
    %v1445 = vld [vmem:[%s14 + $0x1a0] sm:$0xff]
    %v1446 = vld [vmem:[%s14 + $0x1a8] sm:$0xff]
    %v1447 = vld [vmem:[%s14 + $0x1b0] sm:$0xff]
    %v1448 = vld [vmem:[%s14 + $0x1b8] sm:$0xff]
    %v1449 = vld [vmem:[%s14 + $0x1c0] sm:$0xff]
    %v1450 = vld [vmem:[%s14 + $0x1c8] sm:$0xff]
    %v1451 = vld [vmem:[%s14 + $0x1d0] sm:$0xff]
    %v1452 = vld [vmem:[%s14 + $0x1d8] sm:$0xff]
    %v1453 = vld [vmem:[%s14 + $0x1e0] sm:$0xff]
    %v1454 = vld [vmem:[%s14 + $0x1e8] sm:$0xff]
    %v1455 = vld [vmem:[%s14 + $0x1f0] sm:$0xff]
    %v1456 = vld [vmem:[%s14 + $0x1f8] sm:$0xff]
    %v1457 = vld [vmem:[%s14 + $0x200] sm:$0xff]
    %v1458 = vld [vmem:[%s14 + $0x208] sm:$0xff]
    %v1459 = vld [vmem:[%s14 + $0x210] sm:$0xff]
    %v1460 = vld [vmem:[%s14 + $0x218] sm:$0xff]
    %v1461 = vld [vmem:[%s14 + $0x220] sm:$0xff]
    %v1462 = vld [vmem:[%s14 + $0x228] sm:$0xff]
    %v1463 = vld [vmem:[%s14 + $0x230] sm:$0xff]
    %v1464 = vld [vmem:[%s14 + $0x238] sm:$0xff]
    %v1465 = vld [vmem:[%s14 + $0x240] sm:$0xff]
    %v1466 = vld [vmem:[%s14 + $0x248] sm:$0xff]
    %v1467 = vld [vmem:[%s14 + $0x250] sm:$0xff]
    %v1468 = vld [vmem:[%s14 + $0x258] sm:$0xff]
    %v1469 = vld [vmem:[%s14 + $0x260] sm:$0xff]
    %v1470 = vld [vmem:[%s14 + $0x268] sm:$0xff]
    %v1471 = vld [vmem:[%s14 + $0x270] sm:$0xff]
    %v1472 = vld [vmem:[%s14 + $0x278] sm:$0xff]
    %v1473 = vld [vmem:[%s14 + $0x280] sm:$0xff]
    %v1474 = vld [vmem:[%s14 + $0x288] sm:$0xff]
    %v1475 = vld [vmem:[%s14 + $0x290] sm:$0xff]
    %v1476 = vld [vmem:[%s14 + $0x298] sm:$0xff]
    %v1477 = vld [vmem:[%s14 + $0x2a0] sm:$0xff]
    %v1478 = vld [vmem:[%s14 + $0x2a8] sm:$0xff]
    %v1479 = vld [vmem:[%s14 + $0x2b0] sm:$0xff]
    %v1480 = vld [vmem:[%s14 + $0x2b8] sm:$0xff]
    %v1481 = vld [vmem:[%s14 + $0x2c0] sm:$0xff]
    %v1482 = vld [vmem:[%s14 + $0x2c8] sm:$0xff]
    %v1483 = vld [vmem:[%s14 + $0x2d0] sm:$0xff]
    %v1484 = vld [vmem:[%s14 + $0x2d8] sm:$0xff]
    %v1485 = vld [vmem:[%s14 + $0x2e0] sm:$0xff]
    %v1486 = vld [vmem:[%s14 + $0x2e8] sm:$0xff]
    %v1487 = vld [vmem:[%s14 + $0x2f0] sm:$0xff]
    %v1488 = vld [vmem:[%s14 + $0x2f8] sm:$0xff]
    %v1489 = vld [vmem:[%s14 + $0x300] sm:$0xff]
    %v1490 = vld [vmem:[%s14 + $0x308] sm:$0xff]
    %v1491 = vld [vmem:[%s14 + $0x310] sm:$0xff]
    %v1492 = vld [vmem:[%s14 + $0x318] sm:$0xff]
    %v1493 = vld [vmem:[%s14 + $0x320] sm:$0xff]
    %v1494 = vld [vmem:[%s14 + $0x328] sm:$0xff]
    %v1495 = vld [vmem:[%s14 + $0x330] sm:$0xff]
    %v1496 = vld [vmem:[%s14 + $0x338] sm:$0xff]
    %v1497 = vld [vmem:[%s14 + $0x340] sm:$0xff]
    %v1498 = vld [vmem:[%s14 + $0x348] sm:$0xff]
    %v1499 = vld [vmem:[%s14 + $0x350] sm:$0xff]
    %v1500 = vld [vmem:[%s14 + $0x358] sm:$0xff]
    %v1501 = vld [vmem:[%s14 + $0x360] sm:$0xff]
    %v1502 = vld [vmem:[%s14 + $0x368] sm:$0xff]
    %v1503 = vld [vmem:[%s14 + $0x370] sm:$0xff]
    %v1504 = vld [vmem:[%s14 + $0x378] sm:$0xff]
    %v1505 = vld [vmem:[%s14 + $0x380] sm:$0xff]
    %v1506 = vld [vmem:[%s14 + $0x388] sm:$0xff]
    %v1507 = vld [vmem:[%s14 + $0x390] sm:$0xff]
    %v1508 = vld [vmem:[%s14 + $0x398] sm:$0xff]
    %v1509 = vld [vmem:[%s14 + $0x3a0] sm:$0xff]
    %v1510 = vld [vmem:[%s14 + $0x3a8] sm:$0xff]
    %v1511 = vld [vmem:[%s14 + $0x3b0] sm:$0xff]
    %v1512 = vld [vmem:[%s14 + $0x3b8] sm:$0xff]
    %v1513 = vld [vmem:[%s14 + $0x3c0] sm:$0xff]
    %v1514 = vld [vmem:[%s14 + $0x3c8] sm:$0xff]
    %v1515 = vld [vmem:[%s14 + $0x3d0] sm:$0xff]
    %v1516 = vld [vmem:[%s14 + $0x3d8] sm:$0xff]
    %v1517 = vld [vmem:[%s14 + $0x3e0] sm:$0xff]
    %v1518 = vld [vmem:[%s14 + $0x3e8] sm:$0xff]
    %v1519 = vld [vmem:[%s14 + $0x3f0] sm:$0xff]
    %v1520 = vld [vmem:[%s14 + $0x3f8] sm:$0xff]
    %1521 = vmatpush.msra.mxu0 %v1423
    %1522 = vmatpush.msra.mxu0 %v1421
    %1523 = vmatpush.msra.mxu0 %v1419
    %1524 = vmatpush.msra.mxu0 %v1417
    %1525 = vmatpush.msra.mxu0 %v1415
    %1526 = vmatpush.msra.mxu0 %v1413
    %1527 = vmatpush.msra.mxu0 %v1411
    %1528 = vmatpush.msra.mxu0 %v1409
    %1529 = vmatpush.msra.mxu0 %v1407
    %1530 = vmatpush.msra.mxu0 %v1405
    %1531 = vmatpush.msra.mxu0 %v1403
    %1532 = vmatpush.msra.mxu0 %v1401
    %1533 = vmatpush.msra.mxu0 %v1399
    %1534 = vmatpush.msra.mxu0 %v1397
    %1535 = vmatpush.msra.mxu0 %v1395
    %1536 = vmatpush.msra.mxu0 %v1393
    %1537 = vmatmul.f32.gmra.mxu0 %v1359
    %v1538 = vpop.f32.mrf.mxu0
    %v1539 = vadd.f32 0.0, %v1538
    %1540 = vdwg.mxu0
    %1541 = vmatpush.msra.mxu0 %v1455
    %1542 = vmatpush.msra.mxu0 %v1453
    %1543 = vmatpush.msra.mxu0 %v1451
    %1544 = vmatpush.msra.mxu0 %v1449
    %1545 = vmatpush.msra.mxu0 %v1447
    %1546 = vmatpush.msra.mxu0 %v1445
    %1547 = vmatpush.msra.mxu0 %v1443
    %1548 = vmatpush.msra.mxu0 %v1441
    %1549 = vmatpush.msra.mxu0 %v1439
    %1550 = vmatpush.msra.mxu0 %v1437
    %1551 = vmatpush.msra.mxu0 %v1435
    %1552 = vmatpush.msra.mxu0 %v1433
    %1553 = vmatpush.msra.mxu0 %v1431
    %1554 = vmatpush.msra.mxu0 %v1429
    %1555 = vmatpush.msra.mxu0 %v1427
    %1556 = vmatpush.msra.mxu0 %v1425
    %1557 = vmatmul.f32.gmra.mxu0 %v1390
    %v1558 = vpop.f32.mrf.mxu0
    %v1559 = vadd.f32 %v1539, %v1558
    %1560 = vdwg.mxu0
    %1561 = vmatpush.msra.mxu0 %v1487
    %1562 = vmatpush.msra.mxu0 %v1485
    %1563 = vmatpush.msra.mxu0 %v1483
    %1564 = vmatpush.msra.mxu0 %v1481
    %1565 = vmatpush.msra.mxu0 %v1479
    %1566 = vmatpush.msra.mxu0 %v1477
    %1567 = vmatpush.msra.mxu0 %v1475
    %1568 = vmatpush.msra.mxu0 %v1473
    %1569 = vmatpush.msra.mxu0 %v1471
    %1570 = vmatpush.msra.mxu0 %v1469
    %1571 = vmatpush.msra.mxu0 %v1467
    %1572 = vmatpush.msra.mxu0 %v1465
    %1573 = vmatpush.msra.mxu0 %v1463
    %1574 = vmatpush.msra.mxu0 %v1461
    %1575 = vmatpush.msra.mxu0 %v1459
    %1576 = vmatpush.msra.mxu0 %v1457
    %1577 = vmatmul.f32.gmra.mxu0 %v1391
    %v1578 = vpop.f32.mrf.mxu0
    %v1579 = vadd.f32 %v1559, %v1578
    %1580 = vdwg.mxu0
    %1581 = vmatpush.msra.mxu0 %v1519
    %1582 = vmatpush.msra.mxu0 %v1517
    %1583 = vmatpush.msra.mxu0 %v1515
    %1584 = vmatpush.msra.mxu0 %v1513
    %1585 = vmatpush.msra.mxu0 %v1511
    %1586 = vmatpush.msra.mxu0 %v1509
    %1587 = vmatpush.msra.mxu0 %v1507
    %1588 = vmatpush.msra.mxu0 %v1505
    %1589 = vmatpush.msra.mxu0 %v1503
    %1590 = vmatpush.msra.mxu0 %v1501
    %1591 = vmatpush.msra.mxu0 %v1499
    %1592 = vmatpush.msra.mxu0 %v1497
    %1593 = vmatpush.msra.mxu0 %v1495
    %1594 = vmatpush.msra.mxu0 %v1493
    %1595 = vmatpush.msra.mxu0 %v1491
    %1596 = vmatpush.msra.mxu0 %v1489
    %1597 = vmatmul.f32.gmra.mxu0 %v1392
    %v1598 = vpop.f32.mrf.mxu0
    %v1599 = vadd.f32 %v1579, %v1598
    %1600 = vdwg.mxu0
    %1601 = vmatpush.msra.mxu0 %v1424
    %1602 = vmatpush.msra.mxu0 %v1422
    %1603 = vmatpush.msra.mxu0 %v1420
    %1604 = vmatpush.msra.mxu0 %v1418
    %1605 = vmatpush.msra.mxu0 %v1416
    %1606 = vmatpush.msra.mxu0 %v1414
    %1607 = vmatpush.msra.mxu0 %v1412
    %1608 = vmatpush.msra.mxu0 %v1410
    %1609 = vmatpush.msra.mxu0 %v1408
    %1610 = vmatpush.msra.mxu0 %v1406
    %1611 = vmatpush.msra.mxu0 %v1404
    %1612 = vmatpush.msra.mxu0 %v1402
    %1613 = vmatpush.msra.mxu0 %v1400
    %1614 = vmatpush.msra.mxu0 %v1398
    %1615 = vmatpush.msra.mxu0 %v1396
    %1616 = vmatpush.msra.mxu0 %v1394
    %1617 = vmatmul.f32.gmra.mxu0 %v1359
    %v1618 = vpop.f32.mrf.mxu0
    %v1619 = vadd.f32 0.0, %v1618
    %1620 = vdwg.mxu0
    %1621 = vmatpush.msra.mxu0 %v1456
    %1622 = vmatpush.msra.mxu0 %v1454
    %1623 = vmatpush.msra.mxu0 %v1452
    %1624 = vmatpush.msra.mxu0 %v1450
    %1625 = vmatpush.msra.mxu0 %v1448
    %1626 = vmatpush.msra.mxu0 %v1446
    %1627 = vmatpush.msra.mxu0 %v1444
    %1628 = vmatpush.msra.mxu0 %v1442
    %1629 = vmatpush.msra.mxu0 %v1440
    %1630 = vmatpush.msra.mxu0 %v1438
    %1631 = vmatpush.msra.mxu0 %v1436
    %1632 = vmatpush.msra.mxu0 %v1434
    %1633 = vmatpush.msra.mxu0 %v1432
    %1634 = vmatpush.msra.mxu0 %v1430
    %1635 = vmatpush.msra.mxu0 %v1428
    %1636 = vmatpush.msra.mxu0 %v1426
    %1637 = vmatmul.f32.gmra.mxu0 %v1390
    %v1638 = vpop.f32.mrf.mxu0
    %v1639 = vadd.f32 %v1619, %v1638
    %1640 = vdwg.mxu0
    %1641 = vmatpush.msra.mxu0 %v1488
    %1642 = vmatpush.msra.mxu0 %v1486
    %1643 = vmatpush.msra.mxu0 %v1484
    %1644 = vmatpush.msra.mxu0 %v1482
    %1645 = vmatpush.msra.mxu0 %v1480
    %1646 = vmatpush.msra.mxu0 %v1478
    %1647 = vmatpush.msra.mxu0 %v1476
    %1648 = vmatpush.msra.mxu0 %v1474
    %1649 = vmatpush.msra.mxu0 %v1472
    %1650 = vmatpush.msra.mxu0 %v1470
    %1651 = vmatpush.msra.mxu0 %v1468
    %1652 = vmatpush.msra.mxu0 %v1466
    %1653 = vmatpush.msra.mxu0 %v1464
    %1654 = vmatpush.msra.mxu0 %v1462
    %1655 = vmatpush.msra.mxu0 %v1460
    %1656 = vmatpush.msra.mxu0 %v1458
    %1657 = vmatmul.f32.gmra.mxu0 %v1391
    %v1658 = vpop.f32.mrf.mxu0
    %v1659 = vadd.f32 %v1639, %v1658
    %1660 = vdwg.mxu0
    %1661 = vmatpush.msra.mxu0 %v1520
    %1662 = vmatpush.msra.mxu0 %v1518
    %1663 = vmatpush.msra.mxu0 %v1516
    %1664 = vmatpush.msra.mxu0 %v1514
    %1665 = vmatpush.msra.mxu0 %v1512
    %1666 = vmatpush.msra.mxu0 %v1510
    %1667 = vmatpush.msra.mxu0 %v1508
    %1668 = vmatpush.msra.mxu0 %v1506
    %1669 = vmatpush.msra.mxu0 %v1504
    %1670 = vmatpush.msra.mxu0 %v1502
    %1671 = vmatpush.msra.mxu0 %v1500
    %1672 = vmatpush.msra.mxu0 %v1498
    %1673 = vmatpush.msra.mxu0 %v1496
    %1674 = vmatpush.msra.mxu0 %v1494
    %1675 = vmatpush.msra.mxu0 %v1492
    %1676 = vmatpush.msra.mxu0 %v1490
    %1677 = vmatmul.f32.gmra.mxu0 %v1392
    %v1678 = vpop.f32.mrf.mxu0
    %v1679 = vadd.f32 %v1659, %v1678
    %1680 = vdwg.mxu0
    %1681 = vmatpush.msra.mxu0 0.0
    %1682 = vmatpush.msra.mxu0 0.0
    %1683 = vmatpush.msra.mxu0 0.0
    %1684 = vmatpush.msra.mxu0 0.0
    %1685 = vmatpush.msra.mxu0 0.0
    %1686 = vmatpush.msra.mxu0 0.0
    %1687 = vmatpush.msra.mxu0 0.0
    %1688 = vmatpush.msra.mxu0 0.0
    %1689 = vmatpush.msra.mxu0 0.0
    %1690 = vmatpush.msra.mxu0 0.0
    %1691 = vmatpush.msra.mxu0 0.0
    %1692 = vmatpush.msra.mxu0 0.0
    %1693 = vmatpush.msra.mxu0 0.0
    %1694 = vmatpush.msra.mxu0 %v512
    %1695 = vmatpush.msra.mxu0 %v472
    %1696 = vmatpush.msra.mxu0 %v432
    %1697 = vmatmul.f32.gmra.mxu0 %v1001
    %v1698 = vpop.f32.mrf.mxu0
    %v1699 = vadd.f32 %v988, %v1698
    %1700 = vmatmul.f32.gmra.mxu0 %v1004
    %v1701 = vpop.f32.mrf.mxu0
    %v1702 = vadd.f32 %v993, %v1701
    %1703 = vmatmul.f32.gmra.mxu0 %v1007
    %v1704 = vpop.f32.mrf.mxu0
    %v1705 = vadd.f32 %v998, %v1704
    %1706 = vdwg.mxu0
    %v1707 = vmul.f32 %v1699, 0.2
    %v1708 = vmul.f32 %v1702, 0.2
    %v1709 = vmul.f32 %v1705, 0.2
    %v1710 = vmax.f32 %v1699, %v1707
    %v1711 = vmax.f32 %v1702, %v1708
    %v1712 = vmax.f32 %v1705, %v1709
    %v1713 = vld [vmem:[#allocation9] sm:$0xff]
    %v1714 = vld [vmem:[#allocation9 + $0x8] sm:$0xff]
    %v1715 = vld [vmem:[#allocation9 + $0x10] sm:$0xff]
    %v1716 = vld [vmem:[#allocation9 + $0x18] sm:$0xff]
    %v1717 = vld [vmem:[#allocation9 + $0x20] sm:$0xff]
    %v1718 = vld [vmem:[#allocation9 + $0x28] sm:$0xff]
    %v1719 = vld [vmem:[#allocation9 + $0x30] sm:$0xff]
    %v1720 = vld [vmem:[#allocation9 + $0x38] sm:$0xff]
    %v1721 = vld [vmem:[#allocation9 + $0x40] sm:$0xff]
    %v1722 = vld [vmem:[#allocation9 + $0x48] sm:$0xff]
    %v1723 = vld [vmem:[#allocation9 + $0x50] sm:$0xff]
    %v1724 = vld [vmem:[#allocation9 + $0x58] sm:$0xff]
    %v1725 = vld [vmem:[#allocation9 + $0x60] sm:$0xff]
    %v1726 = vld [vmem:[#allocation9 + $0x68] sm:$0xff]
    %v1727 = vld [vmem:[#allocation9 + $0x70] sm:$0xff]
    %v1728 = vld [vmem:[#allocation9 + $0x78] sm:$0xff]
    %v1729 = vld [vmem:[#allocation9 + $0x80] sm:$0xff]
    %v1730 = vld [vmem:[#allocation9 + $0x88] sm:$0xff]
    %v1731 = vld [vmem:[#allocation9 + $0x90] sm:$0xff]
    %v1732 = vld [vmem:[#allocation9 + $0x98] sm:$0xff]
    %v1733 = vld [vmem:[#allocation9 + $0xa0] sm:$0xff]
    %v1734 = vld [vmem:[#allocation9 + $0xa8] sm:$0xff]
    %v1735 = vld [vmem:[#allocation9 + $0xb0] sm:$0xff]
    %v1736 = vld [vmem:[#allocation9 + $0xb8] sm:$0xff]
    %v1737 = vld [vmem:[#allocation9 + $0xc0] sm:$0xff]
    %v1738 = vld [vmem:[#allocation9 + $0xc8] sm:$0xff]
    %v1739 = vld [vmem:[#allocation9 + $0xd0] sm:$0xff]
    %v1740 = vld [vmem:[#allocation9 + $0xd8] sm:$0xff]
    %v1741 = vld [vmem:[#allocation9 + $0xe0] sm:$0xff]
    %v1742 = vld [vmem:[#allocation9 + $0xe8] sm:$0xff]
    %v1743 = vld [vmem:[#allocation9 + $0xf0] sm:$0xff]
    %v1744 = vld [vmem:[#allocation9 + $0xf8] sm:$0xff]
    %v1745 = vld [vmem:[#allocation9 + $0x100] sm:$0xff]
    %v1746 = vld [vmem:[#allocation9 + $0x108] sm:$0xff]
    %v1747 = vld [vmem:[#allocation9 + $0x110] sm:$0xff]
    %v1748 = vld [vmem:[#allocation9 + $0x118] sm:$0xff]
    %v1749 = vld [vmem:[#allocation9 + $0x120] sm:$0xff]
    %v1750 = vld [vmem:[#allocation9 + $0x128] sm:$0xff]
    %v1751 = vld [vmem:[#allocation9 + $0x130] sm:$0xff]
    %v1752 = vld [vmem:[#allocation9 + $0x138] sm:$0xff]
    %v1753 = vld [vmem:[#allocation9 + $0x140] sm:$0xff]
    %v1754 = vld [vmem:[#allocation9 + $0x148] sm:$0xff]
    %v1755 = vld [vmem:[#allocation9 + $0x150] sm:$0xff]
    %v1756 = vld [vmem:[#allocation9 + $0x158] sm:$0xff]
    %v1757 = vld [vmem:[#allocation9 + $0x160] sm:$0xff]
    %v1758 = vld [vmem:[#allocation9 + $0x168] sm:$0xff]
    %v1759 = vld [vmem:[#allocation9 + $0x170] sm:$0xff]
    %v1760 = vld [vmem:[#allocation9 + $0x178] sm:$0xff]
    %v1761 = vld [vmem:[#allocation9 + $0x180] sm:$0xff]
    %v1762 = vld [vmem:[#allocation9 + $0x188] sm:$0xff]
    %v1763 = vld [vmem:[#allocation9 + $0x190] sm:$0xff]
    %v1764 = vld [vmem:[#allocation9 + $0x198] sm:$0xff]
    %v1765 = vld [vmem:[#allocation9 + $0x1a0] sm:$0xff]
    %v1766 = vld [vmem:[#allocation9 + $0x1a8] sm:$0xff]
    %v1767 = vld [vmem:[#allocation9 + $0x1b0] sm:$0xff]
    %v1768 = vld [vmem:[#allocation9 + $0x1b8] sm:$0xff]
    %v1769 = vld [vmem:[#allocation9 + $0x1c0] sm:$0xff]
    %v1770 = vld [vmem:[#allocation9 + $0x1c8] sm:$0xff]
    %v1771 = vld [vmem:[#allocation9 + $0x1d0] sm:$0xff]
    %v1772 = vld [vmem:[#allocation9 + $0x1d8] sm:$0xff]
    %v1773 = vld [vmem:[#allocation9 + $0x1e0] sm:$0xff]
    %v1774 = vld [vmem:[#allocation9 + $0x1e8] sm:$0xff]
    %v1775 = vld [vmem:[#allocation9 + $0x1f0] sm:$0xff]
    %v1776 = vld [vmem:[#allocation9 + $0x1f8] sm:$0xff]
    %v1777 = vld [vmem:[#allocation9 + $0x200] sm:$0xff]
    %v1778 = vld [vmem:[#allocation9 + $0x208] sm:$0xff]
    %v1779 = vld [vmem:[#allocation9 + $0x210] sm:$0xff]
    %v1780 = vld [vmem:[#allocation9 + $0x218] sm:$0xff]
    %v1781 = vld [vmem:[#allocation9 + $0x220] sm:$0xff]
    %v1782 = vld [vmem:[#allocation9 + $0x228] sm:$0xff]
    %v1783 = vld [vmem:[#allocation9 + $0x230] sm:$0xff]
    %v1784 = vld [vmem:[#allocation9 + $0x238] sm:$0xff]
    %v1785 = vld [vmem:[#allocation9 + $0x240] sm:$0xff]
    %v1786 = vld [vmem:[#allocation9 + $0x248] sm:$0xff]
    %v1787 = vld [vmem:[#allocation9 + $0x250] sm:$0xff]
    %v1788 = vld [vmem:[#allocation9 + $0x258] sm:$0xff]
    %v1789 = vld [vmem:[#allocation9 + $0x260] sm:$0xff]
    %v1790 = vld [vmem:[#allocation9 + $0x268] sm:$0xff]
    %v1791 = vld [vmem:[#allocation9 + $0x270] sm:$0xff]
    %v1792 = vld [vmem:[#allocation9 + $0x278] sm:$0xff]
    %v1793 = vld [vmem:[#allocation9 + $0x280] sm:$0xff]
    %v1794 = vld [vmem:[#allocation9 + $0x288] sm:$0xff]
    %v1795 = vld [vmem:[#allocation9 + $0x290] sm:$0xff]
    %v1796 = vld [vmem:[#allocation9 + $0x298] sm:$0xff]
    %v1797 = vld [vmem:[#allocation9 + $0x2a0] sm:$0xff]
    %v1798 = vld [vmem:[#allocation9 + $0x2a8] sm:$0xff]
    %v1799 = vld [vmem:[#allocation9 + $0x2b0] sm:$0xff]
    %v1800 = vld [vmem:[#allocation9 + $0x2b8] sm:$0xff]
    %v1801 = vld [vmem:[#allocation9 + $0x2c0] sm:$0xff]
    %v1802 = vld [vmem:[#allocation9 + $0x2c8] sm:$0xff]
    %v1803 = vld [vmem:[#allocation9 + $0x2d0] sm:$0xff]
    %v1804 = vld [vmem:[#allocation9 + $0x2d8] sm:$0xff]
    %v1805 = vld [vmem:[#allocation9 + $0x2e0] sm:$0xff]
    %v1806 = vld [vmem:[#allocation9 + $0x2e8] sm:$0xff]
    %v1807 = vld [vmem:[#allocation9 + $0x2f0] sm:$0xff]
    %v1808 = vld [vmem:[#allocation9 + $0x2f8] sm:$0xff]
    %v1809 = vld [vmem:[#allocation9 + $0x300] sm:$0xff]
    %v1810 = vld [vmem:[#allocation9 + $0x308] sm:$0xff]
    %v1811 = vld [vmem:[#allocation9 + $0x310] sm:$0xff]
    %v1812 = vld [vmem:[#allocation9 + $0x318] sm:$0xff]
    %v1813 = vld [vmem:[#allocation9 + $0x320] sm:$0xff]
    %v1814 = vld [vmem:[#allocation9 + $0x328] sm:$0xff]
    %v1815 = vld [vmem:[#allocation9 + $0x330] sm:$0xff]
    %v1816 = vld [vmem:[#allocation9 + $0x338] sm:$0xff]
    %v1817 = vld [vmem:[#allocation9 + $0x340] sm:$0xff]
    %v1818 = vld [vmem:[#allocation9 + $0x348] sm:$0xff]
    %v1819 = vld [vmem:[#allocation9 + $0x350] sm:$0xff]
    %v1820 = vld [vmem:[#allocation9 + $0x358] sm:$0xff]
    %v1821 = vld [vmem:[#allocation9 + $0x360] sm:$0xff]
    %v1822 = vld [vmem:[#allocation9 + $0x368] sm:$0xff]
    %v1823 = vld [vmem:[#allocation9 + $0x370] sm:$0xff]
    %v1824 = vld [vmem:[#allocation9 + $0x378] sm:$0xff]
    %v1825 = vld [vmem:[#allocation9 + $0x380] sm:$0xff]
    %v1826 = vld [vmem:[#allocation9 + $0x388] sm:$0xff]
    %v1827 = vld [vmem:[#allocation9 + $0x390] sm:$0xff]
    %v1828 = vld [vmem:[#allocation9 + $0x398] sm:$0xff]
    %v1829 = vld [vmem:[#allocation9 + $0x3a0] sm:$0xff]
    %v1830 = vld [vmem:[#allocation9 + $0x3a8] sm:$0xff]
    %v1831 = vld [vmem:[#allocation9 + $0x3b0] sm:$0xff]
    %v1832 = vld [vmem:[#allocation9 + $0x3b8] sm:$0xff]
    %v1833 = vld [vmem:[#allocation9 + $0x3c0] sm:$0xff]
    %v1834 = vld [vmem:[#allocation9 + $0x3c8] sm:$0xff]
    %v1835 = vld [vmem:[#allocation9 + $0x3d0] sm:$0xff]
    %v1836 = vld [vmem:[#allocation9 + $0x3d8] sm:$0xff]
    %v1837 = vld [vmem:[#allocation9 + $0x3e0] sm:$0xff]
    %v1838 = vld [vmem:[#allocation9 + $0x3e8] sm:$0xff]
    %v1839 = vld [vmem:[#allocation9 + $0x3f0] sm:$0xff]
    %v1840 = vld [vmem:[#allocation9 + $0x3f8] sm:$0xff]
    %v1841 = vld [vmem:[#allocation9 + $0x400] sm:$0xff]
    %v1842 = vld [vmem:[#allocation9 + $0x408] sm:$0xff]
    %v1843 = vld [vmem:[#allocation9 + $0x410] sm:$0xff]
    %v1844 = vld [vmem:[#allocation9 + $0x418] sm:$0xff]
    %v1845 = vld [vmem:[#allocation9 + $0x420] sm:$0xff]
    %v1846 = vld [vmem:[#allocation9 + $0x428] sm:$0xff]
    %v1847 = vld [vmem:[#allocation9 + $0x430] sm:$0xff]
    %v1848 = vld [vmem:[#allocation9 + $0x438] sm:$0xff]
    %v1849 = vld [vmem:[#allocation9 + $0x440] sm:$0xff]
    %v1850 = vld [vmem:[#allocation9 + $0x448] sm:$0xff]
    %v1851 = vld [vmem:[#allocation9 + $0x450] sm:$0xff]
    %v1852 = vld [vmem:[#allocation9 + $0x458] sm:$0xff]
    %v1853 = vld [vmem:[#allocation9 + $0x460] sm:$0xff]
    %v1854 = vld [vmem:[#allocation9 + $0x468] sm:$0xff]
    %v1855 = vld [vmem:[#allocation9 + $0x470] sm:$0xff]
    %v1856 = vld [vmem:[#allocation9 + $0x478] sm:$0xff]
    %v1857 = vld [vmem:[#allocation9 + $0x480] sm:$0xff]
    %v1858 = vld [vmem:[#allocation9 + $0x488] sm:$0xff]
    %v1859 = vld [vmem:[#allocation9 + $0x490] sm:$0xff]
    %v1860 = vld [vmem:[#allocation9 + $0x498] sm:$0xff]
    %v1861 = vld [vmem:[#allocation9 + $0x4a0] sm:$0xff]
    %v1862 = vld [vmem:[#allocation9 + $0x4a8] sm:$0xff]
    %v1863 = vld [vmem:[#allocation9 + $0x4b0] sm:$0xff]
    %v1864 = vld [vmem:[#allocation9 + $0x4b8] sm:$0xff]
    %v1865 = vld [vmem:[#allocation9 + $0x4c0] sm:$0xff]
    %v1866 = vld [vmem:[#allocation9 + $0x4c8] sm:$0xff]
    %v1867 = vld [vmem:[#allocation9 + $0x4d0] sm:$0xff]
    %v1868 = vld [vmem:[#allocation9 + $0x4d8] sm:$0xff]
    %v1869 = vld [vmem:[#allocation9 + $0x4e0] sm:$0xff]
    %v1870 = vld [vmem:[#allocation9 + $0x4e8] sm:$0xff]
    %v1871 = vld [vmem:[#allocation9 + $0x4f0] sm:$0xff]
    %v1872 = vld [vmem:[#allocation9 + $0x4f8] sm:$0xff]
    %1873 = vmatpush.msra.mxu0 %v1743
    %1874 = vmatpush.msra.mxu0 %v1741
    %1875 = vmatpush.msra.mxu0 %v1739
    %1876 = vmatpush.msra.mxu0 %v1737
    %1877 = vmatpush.msra.mxu0 %v1735
    %1878 = vmatpush.msra.mxu0 %v1733
    %1879 = vmatpush.msra.mxu0 %v1731
    %1880 = vmatpush.msra.mxu0 %v1729
    %1881 = vmatpush.msra.mxu0 %v1727
    %1882 = vmatpush.msra.mxu0 %v1725
    %1883 = vmatpush.msra.mxu0 %v1723
    %1884 = vmatpush.msra.mxu0 %v1721
    %1885 = vmatpush.msra.mxu0 %v1719
    %1886 = vmatpush.msra.mxu0 %v1717
    %1887 = vmatpush.msra.mxu0 %v1715
    %1888 = vmatpush.msra.mxu0 %v1713
    %1889 = vmatmul.f32.gmra.mxu0 %v1599
    %v1890 = vpop.f32.mrf.mxu0
    %v1891 = vadd.f32 0.0, %v1890
    %1892 = vdwg.mxu0
    %1893 = vmatpush.msra.mxu0 %v1775
    %1894 = vmatpush.msra.mxu0 %v1773
    %1895 = vmatpush.msra.mxu0 %v1771
    %1896 = vmatpush.msra.mxu0 %v1769
    %1897 = vmatpush.msra.mxu0 %v1767
    %1898 = vmatpush.msra.mxu0 %v1765
    %1899 = vmatpush.msra.mxu0 %v1763
    %1900 = vmatpush.msra.mxu0 %v1761
    %1901 = vmatpush.msra.mxu0 %v1759
    %1902 = vmatpush.msra.mxu0 %v1757
    %1903 = vmatpush.msra.mxu0 %v1755
    %1904 = vmatpush.msra.mxu0 %v1753
    %1905 = vmatpush.msra.mxu0 %v1751
    %1906 = vmatpush.msra.mxu0 %v1749
    %1907 = vmatpush.msra.mxu0 %v1747
    %1908 = vmatpush.msra.mxu0 %v1745
    %1909 = vmatmul.f32.gmra.mxu0 %v1679
    %v1910 = vpop.f32.mrf.mxu0
    %v1911 = vadd.f32 %v1891, %v1910
    %1912 = vdwg.mxu0
    %1913 = vmatpush.msra.mxu0 %v1807
    %1914 = vmatpush.msra.mxu0 %v1805
    %1915 = vmatpush.msra.mxu0 %v1803
    %1916 = vmatpush.msra.mxu0 %v1801
    %1917 = vmatpush.msra.mxu0 %v1799
    %1918 = vmatpush.msra.mxu0 %v1797
    %1919 = vmatpush.msra.mxu0 %v1795
    %1920 = vmatpush.msra.mxu0 %v1793
    %1921 = vmatpush.msra.mxu0 %v1791
    %1922 = vmatpush.msra.mxu0 %v1789
    %1923 = vmatpush.msra.mxu0 %v1787
    %1924 = vmatpush.msra.mxu0 %v1785
    %1925 = vmatpush.msra.mxu0 %v1783
    %1926 = vmatpush.msra.mxu0 %v1781
    %1927 = vmatpush.msra.mxu0 %v1779
    %1928 = vmatpush.msra.mxu0 %v1777
    %1929 = vmatmul.f32.gmra.mxu0 %v1710
    %v1930 = vpop.f32.mrf.mxu0
    %v1931 = vadd.f32 %v1911, %v1930
    %1932 = vdwg.mxu0
    %1933 = vmatpush.msra.mxu0 %v1839
    %1934 = vmatpush.msra.mxu0 %v1837
    %1935 = vmatpush.msra.mxu0 %v1835
    %1936 = vmatpush.msra.mxu0 %v1833
    %1937 = vmatpush.msra.mxu0 %v1831
    %1938 = vmatpush.msra.mxu0 %v1829
    %1939 = vmatpush.msra.mxu0 %v1827
    %1940 = vmatpush.msra.mxu0 %v1825
    %1941 = vmatpush.msra.mxu0 %v1823
    %1942 = vmatpush.msra.mxu0 %v1821
    %1943 = vmatpush.msra.mxu0 %v1819
    %1944 = vmatpush.msra.mxu0 %v1817
    %1945 = vmatpush.msra.mxu0 %v1815
    %1946 = vmatpush.msra.mxu0 %v1813
    %1947 = vmatpush.msra.mxu0 %v1811
    %1948 = vmatpush.msra.mxu0 %v1809
    %1949 = vmatmul.f32.gmra.mxu0 %v1711
    %v1950 = vpop.f32.mrf.mxu0
    %v1951 = vadd.f32 %v1931, %v1950
    %1952 = vdwg.mxu0
    %1953 = vmatpush.msra.mxu0 %v1871
    %1954 = vmatpush.msra.mxu0 %v1869
    %1955 = vmatpush.msra.mxu0 %v1867
    %1956 = vmatpush.msra.mxu0 %v1865
    %1957 = vmatpush.msra.mxu0 %v1863
    %1958 = vmatpush.msra.mxu0 %v1861
    %1959 = vmatpush.msra.mxu0 %v1859
    %1960 = vmatpush.msra.mxu0 %v1857
    %1961 = vmatpush.msra.mxu0 %v1855
    %1962 = vmatpush.msra.mxu0 %v1853
    %1963 = vmatpush.msra.mxu0 %v1851
    %1964 = vmatpush.msra.mxu0 %v1849
    %1965 = vmatpush.msra.mxu0 %v1847
    %1966 = vmatpush.msra.mxu0 %v1845
    %1967 = vmatpush.msra.mxu0 %v1843
    %1968 = vmatpush.msra.mxu0 %v1841
    %1969 = vmatmul.f32.gmra.mxu0 %v1712
    %v1970 = vpop.f32.mrf.mxu0
    %v1971 = vadd.f32 %v1951, %v1970
    %1972 = vdwg.mxu0
    %1973 = vmatpush.msra.mxu0 %v1744
    %1974 = vmatpush.msra.mxu0 %v1742
    %1975 = vmatpush.msra.mxu0 %v1740
    %1976 = vmatpush.msra.mxu0 %v1738
    %1977 = vmatpush.msra.mxu0 %v1736
    %1978 = vmatpush.msra.mxu0 %v1734
    %1979 = vmatpush.msra.mxu0 %v1732
    %1980 = vmatpush.msra.mxu0 %v1730
    %1981 = vmatpush.msra.mxu0 %v1728
    %1982 = vmatpush.msra.mxu0 %v1726
    %1983 = vmatpush.msra.mxu0 %v1724
    %1984 = vmatpush.msra.mxu0 %v1722
    %1985 = vmatpush.msra.mxu0 %v1720
    %1986 = vmatpush.msra.mxu0 %v1718
    %1987 = vmatpush.msra.mxu0 %v1716
    %1988 = vmatpush.msra.mxu0 %v1714
    %1989 = vmatmul.f32.gmra.mxu0 %v1599
    %v1990 = vpop.f32.mrf.mxu0
    %v1991 = vadd.f32 0.0, %v1990
    %1992 = vdwg.mxu0
    %1993 = vmatpush.msra.mxu0 %v1776
    %1994 = vmatpush.msra.mxu0 %v1774
    %1995 = vmatpush.msra.mxu0 %v1772
    %1996 = vmatpush.msra.mxu0 %v1770
    %1997 = vmatpush.msra.mxu0 %v1768
    %1998 = vmatpush.msra.mxu0 %v1766
    %1999 = vmatpush.msra.mxu0 %v1764
    %2000 = vmatpush.msra.mxu0 %v1762
    %2001 = vmatpush.msra.mxu0 %v1760
    %2002 = vmatpush.msra.mxu0 %v1758
    %2003 = vmatpush.msra.mxu0 %v1756
    %2004 = vmatpush.msra.mxu0 %v1754
    %2005 = vmatpush.msra.mxu0 %v1752
    %2006 = vmatpush.msra.mxu0 %v1750
    %2007 = vmatpush.msra.mxu0 %v1748
    %2008 = vmatpush.msra.mxu0 %v1746
    %2009 = vmatmul.f32.gmra.mxu0 %v1679
    %v2010 = vpop.f32.mrf.mxu0
    %v2011 = vadd.f32 %v1991, %v2010
    %2012 = vdwg.mxu0
    %2013 = vmatpush.msra.mxu0 %v1808
    %2014 = vmatpush.msra.mxu0 %v1806
    %2015 = vmatpush.msra.mxu0 %v1804
    %2016 = vmatpush.msra.mxu0 %v1802
    %2017 = vmatpush.msra.mxu0 %v1800
    %2018 = vmatpush.msra.mxu0 %v1798
    %2019 = vmatpush.msra.mxu0 %v1796
    %2020 = vmatpush.msra.mxu0 %v1794
    %2021 = vmatpush.msra.mxu0 %v1792
    %2022 = vmatpush.msra.mxu0 %v1790
    %2023 = vmatpush.msra.mxu0 %v1788
    %2024 = vmatpush.msra.mxu0 %v1786
    %2025 = vmatpush.msra.mxu0 %v1784
    %2026 = vmatpush.msra.mxu0 %v1782
    %2027 = vmatpush.msra.mxu0 %v1780
    %2028 = vmatpush.msra.mxu0 %v1778
    %2029 = vmatmul.f32.gmra.mxu0 %v1710
    %v2030 = vpop.f32.mrf.mxu0
    %v2031 = vadd.f32 %v2011, %v2030
    %2032 = vdwg.mxu0
    %2033 = vmatpush.msra.mxu0 %v1840
    %2034 = vmatpush.msra.mxu0 %v1838
    %2035 = vmatpush.msra.mxu0 %v1836
    %2036 = vmatpush.msra.mxu0 %v1834
    %2037 = vmatpush.msra.mxu0 %v1832
    %2038 = vmatpush.msra.mxu0 %v1830
    %2039 = vmatpush.msra.mxu0 %v1828
    %2040 = vmatpush.msra.mxu0 %v1826
    %2041 = vmatpush.msra.mxu0 %v1824
    %2042 = vmatpush.msra.mxu0 %v1822
    %2043 = vmatpush.msra.mxu0 %v1820
    %2044 = vmatpush.msra.mxu0 %v1818
    %2045 = vmatpush.msra.mxu0 %v1816
    %2046 = vmatpush.msra.mxu0 %v1814
    %2047 = vmatpush.msra.mxu0 %v1812
    %2048 = vmatpush.msra.mxu0 %v1810
    %2049 = vmatmul.f32.gmra.mxu0 %v1711
    %v2050 = vpop.f32.mrf.mxu0
    %v2051 = vadd.f32 %v2031, %v2050
    %2052 = vdwg.mxu0
    %2053 = vmatpush.msra.mxu0 %v1872
    %2054 = vmatpush.msra.mxu0 %v1870
    %2055 = vmatpush.msra.mxu0 %v1868
    %2056 = vmatpush.msra.mxu0 %v1866
    %2057 = vmatpush.msra.mxu0 %v1864
    %2058 = vmatpush.msra.mxu0 %v1862
    %2059 = vmatpush.msra.mxu0 %v1860
    %2060 = vmatpush.msra.mxu0 %v1858
    %2061 = vmatpush.msra.mxu0 %v1856
    %2062 = vmatpush.msra.mxu0 %v1854
    %2063 = vmatpush.msra.mxu0 %v1852
    %2064 = vmatpush.msra.mxu0 %v1850
    %2065 = vmatpush.msra.mxu0 %v1848
    %2066 = vmatpush.msra.mxu0 %v1846
    %2067 = vmatpush.msra.mxu0 %v1844
    %2068 = vmatpush.msra.mxu0 %v1842
    %2069 = vmatmul.f32.gmra.mxu0 %v1712
    %v2070 = vpop.f32.mrf.mxu0
    %v2071 = vadd.f32 %v2051, %v2070
    %2072 = vdwg.mxu0
    %v2073 = vld [vmem:[%s3] sm:$0xff]
    %v2074 = vld [vmem:[%s3 + $0x8] sm:$0xff]
    %v2075 = vld [vmem:[%s3 + $0x10] sm:$0xff]
    %v2076 = vadd.f32 %v224, %v1971
    %v2077 = vadd.f32 %v225, %v2071
    %v2078 = vld [vmem:[%s4] sm:$0xff]
    %v2079 = vld [vmem:[%s4 + $0x8] sm:$0xff]
    %v2080 = vld [vmem:[%s4 + $0x10] sm:$0xff]
    %2082 = vset.pattern.permute.xlu0 0
    %2083 = vperm.xlu0 %2082, %v2078
    %v2084 = vpop.permute.xlu0 %2083
    %2087 = vset.pattern.permute.xlu0 0
    %2088 = vperm.xlu0 %2087, %v2079
    %v2089 = vpop.permute.xlu0 %2088
    %2092 = vset.pattern.permute.xlu0 0
    %2093 = vperm.xlu0 %2092, %v2080
    %v2094 = vpop.permute.xlu0 %2093
    %v2097 = vsel %vm953, %v2073, 0
    %v2100 = vsel %vm953, %v2074, 0
    %v2103 = vsel %vm953, %v2075, 0
    %2105 = vmatpush.msra.mxu0 0.0
    %2106 = vmatpush.msra.mxu0 0.0
    %2107 = vmatpush.msra.mxu0 0.0
    %2108 = vmatpush.msra.mxu0 0.0
    %2109 = vmatpush.msra.mxu0 0.0
    %2110 = vmatpush.msra.mxu0 0.0
    %2111 = vmatpush.msra.mxu0 0.0
    %2112 = vmatpush.msra.mxu0 0.0
    %2113 = vmatpush.msra.mxu0 0.0
    %2114 = vmatpush.msra.mxu0 0.0
    %2115 = vmatpush.msra.mxu0 0.0
    %2116 = vmatpush.msra.mxu0 0.0
    %2117 = vmatpush.msra.mxu0 0.0
    %2118 = vmatpush.msra.mxu0 0.0
    %2119 = vmatpush.msra.mxu0 0.0
    %2120 = vmatpush.msra.mxu0 %v2076
    %2121 = vmatmul.f32.gmra.mxu0 %v2097
    %v2122 = vpop.f32.mrf.mxu0
    %v2123 = vadd.f32 %v2084, %v2122
    %2124 = vmatmul.f32.gmra.mxu0 %v2100
    %v2125 = vpop.f32.mrf.mxu0
    %v2126 = vadd.f32 %v2089, %v2125
    %2127 = vmatmul.f32.gmra.mxu0 %v2103
    %v2128 = vpop.f32.mrf.mxu0
    %v2129 = vadd.f32 %v2094, %v2128
    %2130 = vdwg.mxu0
    %2131 = vmatpush.msra.mxu0 0.0
    %2132 = vmatpush.msra.mxu0 0.0
    %2133 = vmatpush.msra.mxu0 0.0
    %2134 = vmatpush.msra.mxu0 0.0
    %2135 = vmatpush.msra.mxu0 0.0
    %2136 = vmatpush.msra.mxu0 0.0
    %2137 = vmatpush.msra.mxu0 0.0
    %2138 = vmatpush.msra.mxu0 0.0
    %2139 = vmatpush.msra.mxu0 0.0
    %2140 = vmatpush.msra.mxu0 0.0
    %2141 = vmatpush.msra.mxu0 0.0
    %2142 = vmatpush.msra.mxu0 0.0
    %2143 = vmatpush.msra.mxu0 0.0
    %2144 = vmatpush.msra.mxu0 0.0
    %2145 = vmatpush.msra.mxu0 0.0
    %2146 = vmatpush.msra.mxu0 %v2077
    %2147 = vmatmul.f32.gmra.mxu0 %v2097
    %v2148 = vpop.f32.mrf.mxu0
    %v2149 = vadd.f32 %v2084, %v2148
    %2150 = vmatmul.f32.gmra.mxu0 %v2100
    %v2151 = vpop.f32.mrf.mxu0
    %v2152 = vadd.f32 %v2089, %v2151
    %2153 = vmatmul.f32.gmra.mxu0 %v2103
    %v2154 = vpop.f32.mrf.mxu0
    %v2155 = vadd.f32 %v2094, %v2154
    %2156 = vdwg.mxu0
    %2157 = vst [vmem:[%s17] sm:$0xff] %v2123
    %2158 = vst [vmem:[%s17 + $0x8] sm:$0xff] %v2149
    %2159 = vst [vmem:[%s17 + $0x10] sm:$0xff] %v2126
    %2160 = vst [vmem:[%s17 + $0x18] sm:$0xff] %v2152
    %2161 = vst [vmem:[%s17 + $0x20] sm:$0xff] %v2129
    %2162 = vst [vmem:[%s17 + $0x28] sm:$0xff] %v2155
    // Predicated region
    $region98: #{wave_transform.1} parent=1 // pred_check
      _
    $region99: #{wave_transform.1} parent=1 // pred_check_branch
      %2164 = sbr.rel (0) target = $region101
    $region100: #{wave_transform.1} parent=1 // pred_region
      _
    $region101: #{wave_transform.1} parent=1 // pred_fallthru
      _
    // Predicated region
    $region102: #{wave_transform.1} parent=1 // pred_check
      _
    $region103: #{wave_transform.1} parent=1 // pred_check_branch
      %2166 = sbr.rel (0) target = $region105
    $region104: #{wave_transform.1} parent=1 // pred_region
      _
    $region105: #{wave_transform.1} parent=1 // pred_fallthru
      _
    %2167 = vsyncpa [#allocation3], 1
    %2168 = vsyncpa [#allocation5], 1
    %2169 = vsyncpa [#allocation8], 1
    %2170 = vsyncpa [#allocation11], 1

</llo_original>
